<compile_context>
chip_gen: v5e
topology: v5e:2x2
jax: 0.10.0
libtpu: 0.0.40
codegen_flags: <defaults>
</compile_context>

<pallas_src>
import functools

import jax
import jax.numpy as jnp
from jax.experimental import pallas as pl
from jax.experimental.pallas import tpu as pltpu


def _round_up(x, m):
    return (x + m - 1) // m * m


def _conv_stack_kernel(emb_ref, w1_ref, b1_ref, w2_ref, b2_ref,
                       w3_ref, b3_ref, out_ref, *, K):
    """Bt batch elements per grid step: 3 valid conv1d layers as im2col GEMMs
    (bf16 x bf16 -> f32), then global max-pool + ReLU."""

    def conv(x_in, w_ref, b_ref):
        bt, l_in, c_in = x_in.shape
        l_out = l_in - K + 1
        c_out = w_ref.shape[1]
        # im2col: K shifted views concatenated on the channel (lane) axis.
        cols = jnp.concatenate(
            [x_in[:, k:k + l_out, :] for k in range(K)], axis=-1)  # (bt, l_out, K*c_in)
        # Fold the batch tile into the matmul M dimension: one big MXU GEMM.
        y = jnp.dot(cols.reshape(bt * l_out, K * c_in), w_ref[...],
                    preferred_element_type=jnp.float32)            # (bt*l_out, c_out) f32
        return y.reshape(bt, l_out, c_out) + b_ref[...]            # f32, bias broadcast

    x = emb_ref[...]                                   # (Bt, L, 128) bf16
    h = conv(x, w1_ref, b1_ref)                        # (Bt, L1,   C)   f32
    h = conv(h.astype(jnp.bfloat16), w2_ref, b2_ref)   # (Bt, L2,  2C)   f32
    h = conv(h.astype(jnp.bfloat16), w3_ref, b3_ref)   # (Bt, L3,  C3p)  f32
    # Global max-pool over length, then ReLU (monotone => same result,
    # but only C3p elements of VPU work instead of L3*C3p).
    out_ref[...] = jnp.maximum(jnp.max(h, axis=1), 0.0)


def conv1d_forward(tokens, params, kernel_size, *, batch_tile=64):
    """tokens: (B, L) int32.  Returns (B, 3*channel) float32."""
    emb_table, w1, b1, w2, b2, w3, b3 = params
    B, L = tokens.shape
    E = emb_table.shape[1]
    K = kernel_size
    C1, C2, C3 = w1.shape[2], w2.shape[2], w3.shape[2]
    C3p = _round_up(C3, 128)                    # lane-dense output block

    # Batch tile: multiple of 8 (sublane-aligned output block), capped.
    Bt = min(_round_up(B, 8), batch_tile)
    B_pad = _round_up(B, Bt)
    if B_pad != B:
        tokens = jnp.pad(tokens, ((0, B_pad - B), (0, 0)))

    # Glue: embedding gather + bf16 staging for the MXU.
    emb = emb_table[tokens].astype(jnp.bfloat16)            # (B_pad, L, E)

    # Weights pre-reshaped to im2col layout (K*C_in, C_out) and cast to bf16.
    # conv3's output channels are zero-padded to C3p so the kernel's output
    # block (Bt, C3p) is sublane/lane dense (no masked stores).
    w1k = w1.reshape(K * E, C1).astype(jnp.bfloat16)
    w2k = w2.reshape(K * C1, C2).astype(jnp.bfloat16)
    w3k = jnp.pad(w3, ((0, 0), (0, 0), (0, C3p - C3))
                  ).reshape(K * C2, C3p).astype(jnp.bfloat16)
    # Biases stay f32 (elementwise path kept in f32, esp. for v5e).
    b1k = b1.reshape(1, 1, C1)
    b2k = b2.reshape(1, 1, C2)
    b3k = jnp.pad(b3, ((0, 0), (0, C3p - C3))).reshape(1, 1, C3p)

    L1, L2, L3 = L - K + 1, L - 2 * K + 2, L - 3 * K + 3
    flops = 2 * B_pad * (L1 * K * E * C1 + L2 * K * C1 * C2 + L3 * K * C2 * C3p)
    bytes_accessed = (emb.size * 2
                      + (w1k.size + w2k.size + w3k.size) * 2
                      + (b1k.size + b2k.size + b3k.size) * 4
                      + B_pad * C3p * 4)

    kernel = functools.partial(_conv_stack_kernel, K=K)
    c3 = lambda b: (0, 0, 0)
    c2 = lambda b: (0, 0)

    out = pl.pallas_call(
        kernel,
        out_shape=jax.ShapeDtypeStruct((B_pad, C3p), jnp.float32),
        grid_spec=pltpu.PrefetchScalarGridSpec(
            num_scalar_prefetch=0,
            grid=(B_pad // Bt,),
            in_specs=[
                pl.BlockSpec((Bt, L, E), lambda b: (b, 0, 0)),   # embeddings
                pl.BlockSpec(w1k.shape, c2),
                pl.BlockSpec(b1k.shape, c3),
                pl.BlockSpec(w2k.shape, c2),
                pl.BlockSpec(b2k.shape, c3),
                pl.BlockSpec(w3k.shape, c2),
                pl.BlockSpec(b3k.shape, c3),
            ],
            out_specs=pl.BlockSpec((Bt, C3p), lambda b: (b, 0)),
        ),
        compiler_params=pltpu.CompilerParams(
            dimension_semantics=("parallel",)),
        cost_estimate=pl.CostEstimate(
            flops=flops, transcendentals=0, bytes_accessed=bytes_accessed),
    )(emb, w1k, b1k, w2k, b2k, w3k, b3k)

    return out[:B, :C3]


def reference_forward(tokens, params, K):
    """Pure-JAX f32 reference mimicking the PyTorch forward (NCW convs)."""
    emb_table, w1, b1, w2, b2, w3, b3 = params
    x = emb_table[tokens]                             # (B, L, 128)
    x = jnp.transpose(x, (0, 2, 1))                   # (B, 128, L)  == permute(0,2,1)

    def conv(x, w_kio, b):
        w = jnp.transpose(w_kio, (2, 1, 0))           # -> (C_out, C_in, K)
        y = jax.lax.conv_general_dilated(
            x, w, window_strides=(1,), padding="VALID",
            dimension_numbers=("NCH", "OIH", "NCH"))
        return y + b[0][None, :, None]

    x = conv(x, w1, b1)
    x = conv(x, w2, b2)
    x = conv(x, w3, b3)
    x = jnp.maximum(x, 0.0)
    return jnp.max(x, axis=-1)                        # AdaptiveMaxPool1d(1).squeeze(-1)


def init_params(key, vocab_size, channel, kernel_size):
    keys = jax.random.split(key, 7)
    emb_table = jax.random.normal(keys[0], (vocab_size, 128), jnp.float32)

    def conv_params(kw, kb, c_in, c_out):
        bound = 1.0 / (c_in * kernel_size) ** 0.5     # PyTorch default uniform bound
        w = jax.random.uniform(kw, (kernel_size, c_in, c_out),
                               jnp.float32, -bound, bound)
        b = jax.random.uniform(kb, (1, c_out), jnp.float32, -bound, bound)
        return w, b

    w1, b1 = conv_params(keys[1], keys[2], 128, channel)
    w2, b2 = conv_params(keys[3], keys[4], channel, channel * 2)
    w3, b3 = conv_params(keys[5], keys[6], channel * 2, channel * 3)
    return (emb_table, w1, b1, w2, b2, w3, b3)


if __name__ == "__main__":
    vocab_size, channel, kernel_size = 32, 8, 3
    B, L = 2, 16

    key = jax.random.PRNGKey(0)
    pkey, tkey = jax.random.split(key)
    params = init_params(pkey, vocab_size, channel, kernel_size)
    tokens = jax.random.randint(tkey, (B, L), 0, vocab_size, dtype=jnp.int32)

    out = conv1d_forward(tokens, params, kernel_size)
    out = jax.block_until_ready(out)

    ref = reference_forward(tokens, params, kernel_size)
    assert out.shape == (B, 3 * channel), out.shape
    assert jnp.allclose(out, ref, atol=2e-2, rtol=2e-2), \
        f"max abs err = {jnp.max(jnp.abs(out - ref))}"
    print("KERNEL_OK")
</pallas_src>

<mosaic_0001>
module attributes {stable_mosaic.version = 11 : i64} {
  func.func @_conv_stack_kernel(%arg0: i32, %arg1: memref<8x16x128xbf16, #tpu.memory_space<vmem>>, %arg2: memref<384x8xbf16, #tpu.memory_space<vmem>>, %arg3: memref<1x1x8xf32, #tpu.memory_space<vmem>>, %arg4: memref<24x16xbf16, #tpu.memory_space<vmem>>, %arg5: memref<1x1x16xf32, #tpu.memory_space<vmem>>, %arg6: memref<48x128xbf16, #tpu.memory_space<vmem>>, %arg7: memref<1x1x128xf32, #tpu.memory_space<vmem>>, %arg8: memref<8x128xf32, #tpu.memory_space<vmem>>) attributes {dimension_semantics = [#tpu.dimension_semantics<parallel>], iteration_bounds = array<i64: 1>, scalar_prefetch = 0 : i64, scratch_operands = 0 : i64, tpu.core_type = #tpu.core_type<tc>, window_params = [{transform_indices = @transform_0, window_bounds = array<i64: 8, 16, 128>}, {pipeline_mode = #tpu.pipeline_mode<synchronous>, transform_indices = @transform_1, window_bounds = array<i64: 384, 8>}, {pipeline_mode = #tpu.pipeline_mode<synchronous>, transform_indices = @transform_2, window_bounds = array<i64: 1, 1, 8>}, {pipeline_mode = #tpu.pipeline_mode<synchronous>, transform_indices = @transform_3, window_bounds = array<i64: 24, 16>}, {pipeline_mode = #tpu.pipeline_mode<synchronous>, transform_indices = @transform_4, window_bounds = array<i64: 1, 1, 16>}, {pipeline_mode = #tpu.pipeline_mode<synchronous>, transform_indices = @transform_5, window_bounds = array<i64: 48, 128>}, {pipeline_mode = #tpu.pipeline_mode<synchronous>, transform_indices = @transform_6, window_bounds = array<i64: 1, 1, 128>}, {transform_indices = @transform_7, window_bounds = array<i64: 8, 128>}]} {
    %c0 = arith.constant 0 : index
    %c0_0 = arith.constant 0 : index
    %c0_1 = arith.constant 0 : index
    %0 = vector.load %arg1[%c0, %c0_0, %c0_1] : memref<8x16x128xbf16, #tpu.memory_space<vmem>>, vector<8x16x128xbf16>
    %1 = vector.extract_strided_slice %0 {offsets = [0, 0, 0], sizes = [8, 14, 128], strides = [1, 1, 1]} : vector<8x16x128xbf16> to vector<8x14x128xbf16>
    %2 = vector.extract_strided_slice %0 {offsets = [0, 1, 0], sizes = [8, 14, 128], strides = [1, 1, 1]} : vector<8x16x128xbf16> to vector<8x14x128xbf16>
    %3 = vector.extract_strided_slice %0 {offsets = [0, 2, 0], sizes = [8, 14, 128], strides = [1, 1, 1]} : vector<8x16x128xbf16> to vector<8x14x128xbf16>
    %4 = tpu.concatenate %1, %2, %3 in 2 : vector<8x14x128xbf16>, vector<8x14x128xbf16>, vector<8x14x128xbf16> -> vector<8x14x384xbf16>
    %5 = vector.shape_cast %4 : vector<8x14x384xbf16> to vector<112x384xbf16>
    %c0_2 = arith.constant 0 : index
    %c0_3 = arith.constant 0 : index
    %6 = vector.load %arg2[%c0_2, %c0_3] : memref<384x8xbf16, #tpu.memory_space<vmem>>, vector<384x8xbf16>
    %cst = arith.constant dense<0.000000e+00> : vector<112x8xf32>
    %7 = tpu.matmul %5, %6, %cst {dimension_numbers = #tpu.dot_dimension_numbers<[1], [0], [0], [1], [0, 0, 1, 1], [], []>} : vector<112x384xbf16>, vector<384x8xbf16>, vector<112x8xf32> -> vector<112x8xf32>
    %8 = vector.shape_cast %7 : vector<112x8xf32> to vector<8x14x8xf32>
    %c0_4 = arith.constant 0 : index
    %c0_5 = arith.constant 0 : index
    %c0_6 = arith.constant 0 : index
    %9 = vector.load %arg3[%c0_4, %c0_5, %c0_6] : memref<1x1x8xf32, #tpu.memory_space<vmem>>, vector<1x1x8xf32>
    %10 = vector.broadcast %9 : vector<1x1x8xf32> to vector<8x14x8xf32>
    %11 = arith.addf %8, %10 : vector<8x14x8xf32>
    %12 = arith.truncf %11 : vector<8x14x8xf32> to vector<8x14x8xbf16>
    %13 = vector.extract_strided_slice %12 {offsets = [0, 0, 0], sizes = [8, 12, 8], strides = [1, 1, 1]} : vector<8x14x8xbf16> to vector<8x12x8xbf16>
    %14 = vector.extract_strided_slice %12 {offsets = [0, 1, 0], sizes = [8, 12, 8], strides = [1, 1, 1]} : vector<8x14x8xbf16> to vector<8x12x8xbf16>
    %15 = vector.extract_strided_slice %12 {offsets = [0, 2, 0], sizes = [8, 12, 8], strides = [1, 1, 1]} : vector<8x14x8xbf16> to vector<8x12x8xbf16>
    %16 = tpu.concatenate %13, %14, %15 in 2 : vector<8x12x8xbf16>, vector<8x12x8xbf16>, vector<8x12x8xbf16> -> vector<8x12x24xbf16>
    %17 = vector.shape_cast %16 : vector<8x12x24xbf16> to vector<96x24xbf16>
    %c0_7 = arith.constant 0 : index
    %c0_8 = arith.constant 0 : index
    %18 = vector.load %arg4[%c0_7, %c0_8] : memref<24x16xbf16, #tpu.memory_space<vmem>>, vector<24x16xbf16>
    %cst_9 = arith.constant dense<0.000000e+00> : vector<96x16xf32>
    %19 = tpu.matmul %17, %18, %cst_9 {dimension_numbers = #tpu.dot_dimension_numbers<[1], [0], [0], [1], [0, 0, 1, 1], [], []>} : vector<96x24xbf16>, vector<24x16xbf16>, vector<96x16xf32> -> vector<96x16xf32>
    %20 = vector.shape_cast %19 : vector<96x16xf32> to vector<8x12x16xf32>
    %c0_10 = arith.constant 0 : index
    %c0_11 = arith.constant 0 : index
    %c0_12 = arith.constant 0 : index
    %21 = vector.load %arg5[%c0_10, %c0_11, %c0_12] : memref<1x1x16xf32, #tpu.memory_space<vmem>>, vector<1x1x16xf32>
    %22 = vector.broadcast %21 : vector<1x1x16xf32> to vector<8x12x16xf32>
    %23 = arith.addf %20, %22 : vector<8x12x16xf32>
    %24 = arith.truncf %23 : vector<8x12x16xf32> to vector<8x12x16xbf16>
    %25 = vector.extract_strided_slice %24 {offsets = [0, 0, 0], sizes = [8, 10, 16], strides = [1, 1, 1]} : vector<8x12x16xbf16> to vector<8x10x16xbf16>
    %26 = vector.extract_strided_slice %24 {offsets = [0, 1, 0], sizes = [8, 10, 16], strides = [1, 1, 1]} : vector<8x12x16xbf16> to vector<8x10x16xbf16>
    %27 = vector.extract_strided_slice %24 {offsets = [0, 2, 0], sizes = [8, 10, 16], strides = [1, 1, 1]} : vector<8x12x16xbf16> to vector<8x10x16xbf16>
    %28 = tpu.concatenate %25, %26, %27 in 2 : vector<8x10x16xbf16>, vector<8x10x16xbf16>, vector<8x10x16xbf16> -> vector<8x10x48xbf16>
    %29 = vector.shape_cast %28 : vector<8x10x48xbf16> to vector<80x48xbf16>
    %c0_13 = arith.constant 0 : index
    %c0_14 = arith.constant 0 : index
    %30 = vector.load %arg6[%c0_13, %c0_14] : memref<48x128xbf16, #tpu.memory_space<vmem>>, vector<48x128xbf16>
    %cst_15 = arith.constant dense<0.000000e+00> : vector<80x128xf32>
    %31 = tpu.matmul %29, %30, %cst_15 {dimension_numbers = #tpu.dot_dimension_numbers<[1], [0], [0], [1], [0, 0, 1, 1], [], []>} : vector<80x48xbf16>, vector<48x128xbf16>, vector<80x128xf32> -> vector<80x128xf32>
    %32 = vector.shape_cast %31 : vector<80x128xf32> to vector<8x10x128xf32>
    %c0_16 = arith.constant 0 : index
    %c0_17 = arith.constant 0 : index
    %c0_18 = arith.constant 0 : index
    %33 = vector.load %arg7[%c0_16, %c0_17, %c0_18] : memref<1x1x128xf32, #tpu.memory_space<vmem>>, vector<1x1x128xf32>
    %34 = vector.broadcast %33 : vector<1x1x128xf32> to vector<8x10x128xf32>
    %35 = arith.addf %32, %34 : vector<8x10x128xf32>
    %cst_19 = arith.constant dense<0xFF800000> : vector<8x128xf32>
    %36 = vector.multi_reduction <maximumf>, %35, %cst_19 [1] : vector<8x10x128xf32> to vector<8x128xf32>
    %cst_20 = arith.constant 0.000000e+00 : f32
    %37 = vector.broadcast %cst_20 : f32 to vector<8x128xf32>
    %38 = arith.maximumf %36, %37 : vector<8x128xf32>
    %c0_21 = arith.constant 0 : index
    %c0_22 = arith.constant 0 : index
    %39 = vector.load %arg8[%c0_21, %c0_22] : memref<8x128xf32, #tpu.memory_space<vmem>>, vector<8x128xf32>
    tpu.vector_store %arg8[%c0_21, %c0_22], %38 {strides = array<i32>} : memref<8x128xf32, #tpu.memory_space<vmem>>, vector<8x128xf32>,
    return
  }
  func.func @transform_0(%arg0: i32) -> (i32, i32, i32) {
    %c0_i32 = arith.constant 0 : i32
    %c0_i32_0 = arith.constant 0 : i32
    %c0_i32_1 = arith.constant 0 : i32
    return %arg0, %c0_i32, %c0_i32_0 : i32, i32, i32
  }
  func.func @transform_1(%arg0: i32) -> (i32, i32) {
    %c0_i32 = arith.constant 0 : i32
    %c0_i32_0 = arith.constant 0 : i32
    %c0_i32_1 = arith.constant 0 : i32
    return %c0_i32, %c0_i32_0 : i32, i32
  }
  func.func @transform_2(%arg0: i32) -> (i32, i32, i32) {
    %c0_i32 = arith.constant 0 : i32
    %c0_i32_0 = arith.constant 0 : i32
    %c0_i32_1 = arith.constant 0 : i32
    %c0_i32_2 = arith.constant 0 : i32
    return %c0_i32, %c0_i32_0, %c0_i32_1 : i32, i32, i32
  }
  func.func @transform_3(%arg0: i32) -> (i32, i32) {
    %c0_i32 = arith.constant 0 : i32
    %c0_i32_0 = arith.constant 0 : i32
    %c0_i32_1 = arith.constant 0 : i32
    return %c0_i32, %c0_i32_0 : i32, i32
  }
  func.func @transform_4(%arg0: i32) -> (i32, i32, i32) {
    %c0_i32 = arith.constant 0 : i32
    %c0_i32_0 = arith.constant 0 : i32
    %c0_i32_1 = arith.constant 0 : i32
    %c0_i32_2 = arith.constant 0 : i32
    return %c0_i32, %c0_i32_0, %c0_i32_1 : i32, i32, i32
  }
  func.func @transform_5(%arg0: i32) -> (i32, i32) {
    %c0_i32 = arith.constant 0 : i32
    %c0_i32_0 = arith.constant 0 : i32
    %c0_i32_1 = arith.constant 0 : i32
    return %c0_i32, %c0_i32_0 : i32, i32
  }
  func.func @transform_6(%arg0: i32) -> (i32, i32, i32) {
    %c0_i32 = arith.constant 0 : i32
    %c0_i32_0 = arith.constant 0 : i32
    %c0_i32_1 = arith.constant 0 : i32
    %c0_i32_2 = arith.constant 0 : i32
    return %c0_i32, %c0_i32_0, %c0_i32_1 : i32, i32, i32
  }
  func.func @transform_7(%arg0: i32) -> (i32, i32) {
    %c0_i32 = arith.constant 0 : i32
    %c0_i32_0 = arith.constant 0 : i32
    return %arg0, %c0_i32 : i32, i32
  }
}

</mosaic_0001>

<llo_original>
// kernel: tpu_custom_call.1
$region0: #{tpu_custom_call.1}
  #allocation0 [shape = 'u32[]', space=smem, size = 0x4, offset = 0x4, fixed_abs, tag = 'smem constant byte address 0x4 - core index']
  #allocation1 [shape = 'u32[72,128]{1,0:T(1,128)}', space=vmem, size = 0x9000, scoped, tag = 'internal scratch']
  %s0 = inlined_call_operand.vmem [shape: bf16[8,16,128], index: 0, kind: input, shape index: {}]
  %s1 = inlined_call_operand.vmem [shape: bf16[384,8], index: 1, kind: input, shape index: {}]
  %s2 = inlined_call_operand.vmem [shape: f32[1,1,8], index: 2, kind: input, shape index: {}]
  %s3 = inlined_call_operand.vmem [shape: bf16[24,16], index: 3, kind: input, shape index: {}]
  %s4 = inlined_call_operand.vmem [shape: f32[1,1,16], index: 4, kind: input, shape index: {}]
  %s5 = inlined_call_operand.vmem [shape: bf16[48,128], index: 5, kind: input, shape index: {}]
  %s6 = inlined_call_operand.vmem [shape: f32[1,1,128], index: 6, kind: input, shape index: {}]
  %s7 = inlined_call_operand.hbm [shape: f32[8,128], index: 7, kind: output, shape index: {}]
  %s8 = sld [smem:[#allocation0]]
  $region38: #{tpu_custom_call.1} parent=0
    _
  %s10 = ssub.s32 1, %s8
  %s11 = scalar_select 0, %s10, %s8
  $region1: #{tpu_custom_call.1} parent=0
    #allocation2 [shape = 'u8[4096]{0}', space=vmem, size = 0x1000, scoped, tag = 'output window, operand 0, single buffered']
    #allocation3 [shape = 's32[1]{0}', space=sflag, size = 0x4, scoped, tag = 'scoped memory for tpu_custom_call.1']
    %12 = vsyncpa [#allocation3], 0
    // Predicated region
    $region2: #{tpu_custom_call.1} parent=1 // pred_check
      _
    $region3: #{tpu_custom_call.1} parent=1 // pred_check_branch
      %14 = sbr.rel (0) target = $region5
    $region4: #{tpu_custom_call.1} parent=1 // pred_region
      _
    $region5: #{tpu_custom_call.1} parent=1 // pred_fallthru
      _
    // Predicated region
    $region6: #{tpu_custom_call.1} parent=1 // pred_check
      _
    $region7: #{tpu_custom_call.1} parent=1 // pred_check_branch
      %16 = sbr.rel (0) target = $region9
    $region8: #{tpu_custom_call.1} parent=1 // pred_region
      _
    $region9: #{tpu_custom_call.1} parent=1 // pred_fallthru
      _
    // Predicated region
    $region10: #{tpu_custom_call.1} parent=1 // pred_check
      _
    $region11: #{tpu_custom_call.1} parent=1 // pred_check_branch
      %18 = sbr.rel (0) target = $region13
    $region12: #{tpu_custom_call.1} parent=1 // pred_region
      _
    $region13: #{tpu_custom_call.1} parent=1 // pred_fallthru
      _
    // Predicated region
    $region14: #{tpu_custom_call.1} parent=1 // pred_check
      _
    $region15: #{tpu_custom_call.1} parent=1 // pred_check_branch
      %20 = sbr.rel (0) target = $region17
    $region16: #{tpu_custom_call.1} parent=1 // pred_region
      _
    $region17: #{tpu_custom_call.1} parent=1 // pred_fallthru
      _
    // Predicated region
    $region18: #{tpu_custom_call.1} parent=1 // pred_check
      _
    $region19: #{tpu_custom_call.1} parent=1 // pred_check_branch
      %22 = sbr.rel (0) target = $region21
    $region20: #{tpu_custom_call.1} parent=1 // pred_region
      _
    $region21: #{tpu_custom_call.1} parent=1 // pred_fallthru
      _
    // Predicated region
    $region22: #{tpu_custom_call.1} parent=1 // pred_check
      _
    $region23: #{tpu_custom_call.1} parent=1 // pred_check_branch
      %24 = sbr.rel (0) target = $region25
    $region24: #{tpu_custom_call.1} parent=1 // pred_region
      _
    $region25: #{tpu_custom_call.1} parent=1 // pred_fallthru
      _
    // Predicated region
    $region26: #{tpu_custom_call.1} parent=1 // pred_check
      _
    $region27: #{tpu_custom_call.1} parent=1 // pred_check_branch
      %26 = sbr.rel (0) target = $region29
    $region28: #{tpu_custom_call.1} parent=1 // pred_region
      _
    $region29: #{tpu_custom_call.1} parent=1 // pred_fallthru
      _
    %v28 = vld [vmem:[%s0] sm:$0xf]
    %v29 = vld [vmem:[%s0 + $0x4] sm:$0xf]
    %v30 = vld [vmem:[%s0 + $0x8] sm:$0xf]
    %v31 = vld [vmem:[%s0 + $0xc] sm:$0xf]
    %v32 = vld [vmem:[%s0 + $0x10] sm:$0xf]
    %v33 = vld [vmem:[%s0 + $0x14] sm:$0xf]
    %v34 = vld [vmem:[%s0 + $0x18] sm:$0xf]
    %v35 = vld [vmem:[%s0 + $0x1c] sm:$0xf]
    %v36 = vld [vmem:[%s0 + $0x20] sm:$0xf]
    %v37 = vld [vmem:[%s0 + $0x24] sm:$0xf]
    %v38 = vld [vmem:[%s0 + $0x28] sm:$0xf]
    %v39 = vld [vmem:[%s0 + $0x2c] sm:$0xf]
    %v40 = vld [vmem:[%s0 + $0x30] sm:$0xf]
    %v41 = vld [vmem:[%s0 + $0x34] sm:$0xf]
    %v42 = vld [vmem:[%s0 + $0x38] sm:$0xf]
    %v43 = vld [vmem:[%s0 + $0x3c] sm:$0xf]
    %v60 = vunpack.c.l.b16 %v28
    %v61 = vunpack.c.l.b16 %v29
    %v62 = vunpack.c.l.b16 %v30
    %v63 = vunpack.c.l.b16 %v31
    %v64 = vunpack.c.l.b16 %v32
    %v65 = vunpack.c.l.b16 %v33
    %v66 = vunpack.c.l.b16 %v34
    %v67 = vunpack.c.l.b16 %v35
    %v68 = vunpack.c.l.b16 %v36
    %v69 = vunpack.c.l.b16 %v37
    %v70 = vunpack.c.l.b16 %v38
    %v71 = vunpack.c.l.b16 %v39
    %v72 = vunpack.c.l.b16 %v40
    %v73 = vunpack.c.l.b16 %v41
    %v74 = vunpack.c.l.b16 %v42
    %v75 = vunpack.c.l.b16 %v43
    %v76 = vpack.c.b16 %v61, %v60
    %v77 = vpack.c.b16 %v63, %v62
    %v78 = vpack.c.b16 %v65, %v64
    %v79 = vpack.c.b16 %v67, %v66
    %v80 = vpack.c.b16 %v69, %v68
    %v81 = vpack.c.b16 %v71, %v70
    %v82 = vpack.c.b16 %v73, %v72
    %v83 = vpack.c.b16 %v75, %v74
    %v85 = vshrl.u32 %v76, 16
    %v87 = vshll.u32 %v76, 16
    %v89 = vrot.slane %v87, 1
    %v90 = vor.u32 %v85, %v89
    %v92 = vshrl.u32 %v77, 16
    %v94 = vshll.u32 %v77, 16
    %v96 = vrot.slane %v94, 1
    %v97 = vor.u32 %v92, %v96
    %v99 = vshrl.u32 %v78, 16
    %v101 = vshll.u32 %v78, 16
    %v103 = vrot.slane %v101, 1
    %v104 = vor.u32 %v99, %v103
    %v106 = vshrl.u32 %v79, 16
    %v108 = vshll.u32 %v79, 16
    %v110 = vrot.slane %v108, 1
    %v111 = vor.u32 %v106, %v110
    %v113 = vshrl.u32 %v80, 16
    %v115 = vshll.u32 %v80, 16
    %v117 = vrot.slane %v115, 1
    %v118 = vor.u32 %v113, %v117
    %v120 = vshrl.u32 %v81, 16
    %v122 = vshll.u32 %v81, 16
    %v124 = vrot.slane %v122, 1
    %v125 = vor.u32 %v120, %v124
    %v127 = vshrl.u32 %v82, 16
    %v129 = vshll.u32 %v82, 16
    %v131 = vrot.slane %v129, 1
    %v132 = vor.u32 %v127, %v131
    %v134 = vshrl.u32 %v83, 16
    %v136 = vshll.u32 %v83, 16
    %v138 = vrot.slane %v136, 1
    %v139 = vor.u32 %v134, %v138
    %v140 = vrot.slane %v76, 1
    %v141 = vrot.slane %v77, 1
    %v142 = vrot.slane %v78, 1
    %v143 = vrot.slane %v79, 1
    %v144 = vrot.slane %v80, 1
    %v145 = vrot.slane %v81, 1
    %v146 = vrot.slane %v82, 1
    %v147 = vrot.slane %v83, 1
    %v148 = vrot.slane %v90, 7
    %v149 = vrot.slane %v140, 6
    %v150 = vrot.slane %v97, 7
    %v151 = vrot.slane %v141, 6
    %v152 = vrot.slane %v104, 7
    %v153 = vrot.slane %v142, 6
    %v154 = vrot.slane %v111, 7
    %v155 = vrot.slane %v143, 6
    %v156 = vrot.slane %v118, 7
    %v157 = vrot.slane %v144, 6
    %v158 = vrot.slane %v125, 7
    %v159 = vrot.slane %v145, 6
    %v160 = vrot.slane %v132, 7
    %v161 = vrot.slane %v146, 6
    %v162 = vrot.slane %v139, 7
    %v163 = vrot.slane %v147, 6
    %vm164 = vcmask 1040384
    %v166 = vsel %vm164, %v76, %v148
    %vm167 = vcmask 1041408
    %v169 = vsel %vm167, %v166, %v149
    %vm170 = vcmask 1041409
    %v171 = vsel %vm170, %v76, %v148
    %vm172 = vcmask 1042433
    %v173 = vsel %vm172, %v171, %v149
    %v175 = vrot.slane %v173, 1
    %vm176 = vcmask 1042434
    %v177 = vsel %vm176, %v76, %v148
    %vm178 = vcmask 1043458
    %v179 = vsel %vm178, %v177, %v149
    %v181 = vrot.slane %v179, 2
    %vm182 = vcmask 1043459
    %v183 = vsel %vm182, %v76, %v148
    %vm184 = vcmask 1044483
    %v185 = vsel %vm184, %v183, %v149
    %v187 = vrot.slane %v185, 3
    %vm188 = vcmask 1044484
    %v189 = vsel %vm188, %v76, %v148
    %vm190 = vcmask 1045508
    %v191 = vsel %vm190, %v189, %v149
    %v193 = vrot.slane %v191, 4
    %vm194 = vcmask 1045509
    %v195 = vsel %vm194, %v76, %v148
    %vm196 = vcmask 1046533
    %v197 = vsel %vm196, %v195, %v149
    %v199 = vrot.slane %v197, 5
    %vm200 = vcmask 1046534
    %v201 = vsel %vm200, %v76, %v148
    %vm202 = vcmask 1045504
    %v203 = vsel %vm202, %v149, %v201
    %v205 = vrot.slane %v203, 6
    %v207 = vsel %vm164, %v77, %v150
    %v209 = vsel %vm167, %v207, %v151
    %v210 = vsel %vm170, %v77, %v150
    %v211 = vsel %vm172, %v210, %v151
    %v213 = vrot.slane %v211, 1
    %v214 = vsel %vm176, %v77, %v150
    %v215 = vsel %vm178, %v214, %v151
    %v217 = vrot.slane %v215, 2
    %v218 = vsel %vm182, %v77, %v150
    %v219 = vsel %vm184, %v218, %v151
    %v221 = vrot.slane %v219, 3
    %v222 = vsel %vm188, %v77, %v150
    %v223 = vsel %vm190, %v222, %v151
    %v225 = vrot.slane %v223, 4
    %v226 = vsel %vm194, %v77, %v150
    %v227 = vsel %vm196, %v226, %v151
    %v229 = vrot.slane %v227, 5
    %v230 = vsel %vm200, %v77, %v150
    %v231 = vsel %vm202, %v151, %v230
    %v233 = vrot.slane %v231, 6
    %v235 = vsel %vm164, %v78, %v152
    %v237 = vsel %vm167, %v235, %v153
    %v238 = vsel %vm170, %v78, %v152
    %v239 = vsel %vm172, %v238, %v153
    %v241 = vrot.slane %v239, 1
    %v242 = vsel %vm176, %v78, %v152
    %v243 = vsel %vm178, %v242, %v153
    %v245 = vrot.slane %v243, 2
    %v246 = vsel %vm182, %v78, %v152
    %v247 = vsel %vm184, %v246, %v153
    %v249 = vrot.slane %v247, 3
    %v250 = vsel %vm188, %v78, %v152
    %v251 = vsel %vm190, %v250, %v153
    %v253 = vrot.slane %v251, 4
    %v254 = vsel %vm194, %v78, %v152
    %v255 = vsel %vm196, %v254, %v153
    %v257 = vrot.slane %v255, 5
    %v258 = vsel %vm200, %v78, %v152
    %v259 = vsel %vm202, %v153, %v258
    %v261 = vrot.slane %v259, 6
    %v263 = vsel %vm164, %v79, %v154
    %v265 = vsel %vm167, %v263, %v155
    %v266 = vsel %vm170, %v79, %v154
    %v267 = vsel %vm172, %v266, %v155
    %v269 = vrot.slane %v267, 1
    %v270 = vsel %vm176, %v79, %v154
    %v271 = vsel %vm178, %v270, %v155
    %v273 = vrot.slane %v271, 2
    %v274 = vsel %vm182, %v79, %v154
    %v275 = vsel %vm184, %v274, %v155
    %v277 = vrot.slane %v275, 3
    %v278 = vsel %vm188, %v79, %v154
    %v279 = vsel %vm190, %v278, %v155
    %v281 = vrot.slane %v279, 4
    %v282 = vsel %vm194, %v79, %v154
    %v283 = vsel %vm196, %v282, %v155
    %v285 = vrot.slane %v283, 5
    %v286 = vsel %vm200, %v79, %v154
    %v287 = vsel %vm202, %v155, %v286
    %v289 = vrot.slane %v287, 6
    %v291 = vsel %vm164, %v80, %v156
    %v293 = vsel %vm167, %v291, %v157
    %v294 = vsel %vm170, %v80, %v156
    %v295 = vsel %vm172, %v294, %v157
    %v297 = vrot.slane %v295, 1
    %v298 = vsel %vm176, %v80, %v156
    %v299 = vsel %vm178, %v298, %v157
    %v301 = vrot.slane %v299, 2
    %v302 = vsel %vm182, %v80, %v156
    %v303 = vsel %vm184, %v302, %v157
    %v305 = vrot.slane %v303, 3
    %v306 = vsel %vm188, %v80, %v156
    %v307 = vsel %vm190, %v306, %v157
    %v309 = vrot.slane %v307, 4
    %v310 = vsel %vm194, %v80, %v156
    %v311 = vsel %vm196, %v310, %v157
    %v313 = vrot.slane %v311, 5
    %v314 = vsel %vm200, %v80, %v156
    %v315 = vsel %vm202, %v157, %v314
    %v317 = vrot.slane %v315, 6
    %v319 = vsel %vm164, %v81, %v158
    %v321 = vsel %vm167, %v319, %v159
    %v322 = vsel %vm170, %v81, %v158
    %v323 = vsel %vm172, %v322, %v159
    %v325 = vrot.slane %v323, 1
    %v326 = vsel %vm176, %v81, %v158
    %v327 = vsel %vm178, %v326, %v159
    %v329 = vrot.slane %v327, 2
    %v330 = vsel %vm182, %v81, %v158
    %v331 = vsel %vm184, %v330, %v159
    %v333 = vrot.slane %v331, 3
    %v334 = vsel %vm188, %v81, %v158
    %v335 = vsel %vm190, %v334, %v159
    %v337 = vrot.slane %v335, 4
    %v338 = vsel %vm194, %v81, %v158
    %v339 = vsel %vm196, %v338, %v159
    %v341 = vrot.slane %v339, 5
    %v342 = vsel %vm200, %v81, %v158
    %v343 = vsel %vm202, %v159, %v342
    %v345 = vrot.slane %v343, 6
    %v347 = vsel %vm164, %v82, %v160
    %v349 = vsel %vm167, %v347, %v161
    %v350 = vsel %vm170, %v82, %v160
    %v351 = vsel %vm172, %v350, %v161
    %v353 = vrot.slane %v351, 1
    %v354 = vsel %vm176, %v82, %v160
    %v355 = vsel %vm178, %v354, %v161
    %v357 = vrot.slane %v355, 2
    %v358 = vsel %vm182, %v82, %v160
    %v359 = vsel %vm184, %v358, %v161
    %v361 = vrot.slane %v359, 3
    %v362 = vsel %vm188, %v82, %v160
    %v363 = vsel %vm190, %v362, %v161
    %v365 = vrot.slane %v363, 4
    %v366 = vsel %vm194, %v82, %v160
    %v367 = vsel %vm196, %v366, %v161
    %v369 = vrot.slane %v367, 5
    %v370 = vsel %vm200, %v82, %v160
    %v371 = vsel %vm202, %v161, %v370
    %v373 = vrot.slane %v371, 6
    %v375 = vsel %vm164, %v83, %v162
    %v377 = vsel %vm167, %v375, %v163
    %v378 = vsel %vm170, %v83, %v162
    %v379 = vsel %vm172, %v378, %v163
    %v381 = vrot.slane %v379, 1
    %v382 = vsel %vm176, %v83, %v162
    %v383 = vsel %vm178, %v382, %v163
    %v385 = vrot.slane %v383, 2
    %v386 = vsel %vm182, %v83, %v162
    %v387 = vsel %vm184, %v386, %v163
    %v389 = vrot.slane %v387, 3
    %v390 = vsel %vm188, %v83, %v162
    %v391 = vsel %vm190, %v390, %v163
    %v393 = vrot.slane %v391, 4
    %v394 = vsel %vm194, %v83, %v162
    %v395 = vsel %vm196, %v394, %v163
    %v397 = vrot.slane %v395, 5
    %v398 = vsel %vm200, %v83, %v162
    %v399 = vsel %vm202, %v163, %v398
    %v401 = vrot.slane %v399, 6
    %v402 = vld [vmem:[%s1] sm:$0xf]
    %v403 = vld [vmem:[%s1 + $0x4] sm:$0xf]
    %v404 = vld [vmem:[%s1 + $0x8] sm:$0xf]
    %v405 = vld [vmem:[%s1 + $0xc] sm:$0xf]
    %v406 = vld [vmem:[%s1 + $0x10] sm:$0xf]
    %v407 = vld [vmem:[%s1 + $0x14] sm:$0xf]
    %v408 = vld [vmem:[%s1 + $0x18] sm:$0xf]
    %v409 = vld [vmem:[%s1 + $0x1c] sm:$0xf]
    %v410 = vld [vmem:[%s1 + $0x20] sm:$0xf]
    %v411 = vld [vmem:[%s1 + $0x24] sm:$0xf]
    %v412 = vld [vmem:[%s1 + $0x28] sm:$0xf]
    %v413 = vld [vmem:[%s1 + $0x2c] sm:$0xf]
    %v414 = vld [vmem:[%s1 + $0x30] sm:$0xf]
    %v415 = vld [vmem:[%s1 + $0x34] sm:$0xf]
    %v416 = vld [vmem:[%s1 + $0x38] sm:$0xf]
    %v417 = vld [vmem:[%s1 + $0x3c] sm:$0xf]
    %v418 = vld [vmem:[%s1 + $0x40] sm:$0xf]
    %v419 = vld [vmem:[%s1 + $0x44] sm:$0xf]
    %v420 = vld [vmem:[%s1 + $0x48] sm:$0xf]
    %v421 = vld [vmem:[%s1 + $0x4c] sm:$0xf]
    %v422 = vld [vmem:[%s1 + $0x50] sm:$0xf]
    %v423 = vld [vmem:[%s1 + $0x54] sm:$0xf]
    %v424 = vld [vmem:[%s1 + $0x58] sm:$0xf]
    %v425 = vld [vmem:[%s1 + $0x5c] sm:$0xf]
    %v426 = vld [vmem:[%s1 + $0x60] sm:$0xf]
    %v427 = vld [vmem:[%s1 + $0x64] sm:$0xf]
    %v428 = vld [vmem:[%s1 + $0x68] sm:$0xf]
    %v429 = vld [vmem:[%s1 + $0x6c] sm:$0xf]
    %v430 = vld [vmem:[%s1 + $0x70] sm:$0xf]
    %v431 = vld [vmem:[%s1 + $0x74] sm:$0xf]
    %v432 = vld [vmem:[%s1 + $0x78] sm:$0xf]
    %v433 = vld [vmem:[%s1 + $0x7c] sm:$0xf]
    %v434 = vld [vmem:[%s1 + $0x80] sm:$0xf]
    %v435 = vld [vmem:[%s1 + $0x84] sm:$0xf]
    %v436 = vld [vmem:[%s1 + $0x88] sm:$0xf]
    %v437 = vld [vmem:[%s1 + $0x8c] sm:$0xf]
    %v438 = vld [vmem:[%s1 + $0x90] sm:$0xf]
    %v439 = vld [vmem:[%s1 + $0x94] sm:$0xf]
    %v440 = vld [vmem:[%s1 + $0x98] sm:$0xf]
    %v441 = vld [vmem:[%s1 + $0x9c] sm:$0xf]
    %v442 = vld [vmem:[%s1 + $0xa0] sm:$0xf]
    %v443 = vld [vmem:[%s1 + $0xa4] sm:$0xf]
    %v444 = vld [vmem:[%s1 + $0xa8] sm:$0xf]
    %v445 = vld [vmem:[%s1 + $0xac] sm:$0xf]
    %v446 = vld [vmem:[%s1 + $0xb0] sm:$0xf]
    %v447 = vld [vmem:[%s1 + $0xb4] sm:$0xf]
    %v448 = vld [vmem:[%s1 + $0xb8] sm:$0xf]
    %v449 = vld [vmem:[%s1 + $0xbc] sm:$0xf]
    %450 = vst [vmem:[#allocation1] ss:$9 sm:$0xff] %v169
    %s452 = scalar_lea.vmem [#allocation1], 1
    %453 = vst [vmem:[%s452] ss:$9 sm:$0xff] %v175
    %s455 = scalar_lea.vmem [#allocation1], 2
    %456 = vst [vmem:[%s455] ss:$9 sm:$0xff] %v181
    %s458 = scalar_lea.vmem [#allocation1], 3
    %459 = vst [vmem:[%s458] ss:$9 sm:$0xff] %v187
    %s461 = scalar_lea.vmem [#allocation1], 4
    %462 = vst [vmem:[%s461] ss:$9 sm:$0xff] %v193
    %s464 = scalar_lea.vmem [#allocation1], 5
    %465 = vst [vmem:[%s464] ss:$9 sm:$0xff] %v199
    %s467 = scalar_lea.vmem [#allocation1], 6
    %468 = vst [vmem:[%s467] ss:$9 sm:$0xff] %v205
    %s469 = scalar_lea.vmem [#allocation1], 7
    %470 = vst [vmem:[%s469] ss:$9 sm:$0xff] %v209
    %v471 = vld [vmem:[#allocation1] sm:$0xff]
    %v472 = vld [vmem:[#allocation1 + $0x9] sm:$0xff]
    %v473 = vld [vmem:[#allocation1 + $0x12] sm:$0xff]
    %475 = vst [vmem:[#allocation1] ss:$9 sm:$0xff] %v213
    %477 = vst [vmem:[%s452] ss:$9 sm:$0xff] %v217
    %479 = vst [vmem:[%s455] ss:$9 sm:$0xff] %v221
    %481 = vst [vmem:[%s458] ss:$9 sm:$0xff] %v225
    %483 = vst [vmem:[%s461] ss:$9 sm:$0xff] %v229
    %485 = vst [vmem:[%s464] ss:$9 sm:$0xff] %v233
    %486 = vst [vmem:[%s467] ss:$9 sm:$0xff] %v237
    %488 = vst [vmem:[%s469] ss:$9 sm:$0xff] %v241
    %v489 = vld [vmem:[#allocation1] sm:$0xff]
    %v490 = vld [vmem:[#allocation1 + $0x9] sm:$0xff]
    %v491 = vld [vmem:[#allocation1 + $0x12] sm:$0xff]
    %493 = vst [vmem:[#allocation1] ss:$9 sm:$0xff] %v245
    %495 = vst [vmem:[%s452] ss:$9 sm:$0xff] %v249
    %497 = vst [vmem:[%s455] ss:$9 sm:$0xff] %v253
    %499 = vst [vmem:[%s458] ss:$9 sm:$0xff] %v257
    %501 = vst [vmem:[%s461] ss:$9 sm:$0xff] %v261
    %502 = vst [vmem:[%s464] ss:$9 sm:$0xff] %v265
    %504 = vst [vmem:[%s467] ss:$9 sm:$0xff] %v269
    %506 = vst [vmem:[%s469] ss:$9 sm:$0xff] %v273
    %v507 = vld [vmem:[#allocation1] sm:$0xff]
    %v508 = vld [vmem:[#allocation1 + $0x9] sm:$0xff]
    %v509 = vld [vmem:[#allocation1 + $0x12] sm:$0xff]
    %511 = vst [vmem:[#allocation1] ss:$9 sm:$0xff] %v277
    %513 = vst [vmem:[%s452] ss:$9 sm:$0xff] %v281
    %515 = vst [vmem:[%s455] ss:$9 sm:$0xff] %v285
    %517 = vst [vmem:[%s458] ss:$9 sm:$0xff] %v289
    %518 = vst [vmem:[%s461] ss:$9 sm:$0xff] %v293
    %520 = vst [vmem:[%s464] ss:$9 sm:$0xff] %v297
    %522 = vst [vmem:[%s467] ss:$9 sm:$0xff] %v301
    %524 = vst [vmem:[%s469] ss:$9 sm:$0xff] %v305
    %v525 = vld [vmem:[#allocation1] sm:$0xff]
    %v526 = vld [vmem:[#allocation1 + $0x9] sm:$0xff]
    %v527 = vld [vmem:[#allocation1 + $0x12] sm:$0xff]
    %529 = vst [vmem:[#allocation1] ss:$9 sm:$0xff] %v309
    %531 = vst [vmem:[%s452] ss:$9 sm:$0xff] %v313
    %533 = vst [vmem:[%s455] ss:$9 sm:$0xff] %v317
    %534 = vst [vmem:[%s458] ss:$9 sm:$0xff] %v321
    %536 = vst [vmem:[%s461] ss:$9 sm:$0xff] %v325
    %538 = vst [vmem:[%s464] ss:$9 sm:$0xff] %v329
    %540 = vst [vmem:[%s467] ss:$9 sm:$0xff] %v333
    %542 = vst [vmem:[%s469] ss:$9 sm:$0xff] %v337
    %v543 = vld [vmem:[#allocation1] sm:$0xff]
    %v544 = vld [vmem:[#allocation1 + $0x9] sm:$0xff]
    %v545 = vld [vmem:[#allocation1 + $0x12] sm:$0xff]
    %547 = vst [vmem:[#allocation1] ss:$9 sm:$0xff] %v341
    %549 = vst [vmem:[%s452] ss:$9 sm:$0xff] %v345
    %550 = vst [vmem:[%s455] ss:$9 sm:$0xff] %v349
    %552 = vst [vmem:[%s458] ss:$9 sm:$0xff] %v353
    %554 = vst [vmem:[%s461] ss:$9 sm:$0xff] %v357
    %556 = vst [vmem:[%s464] ss:$9 sm:$0xff] %v361
    %558 = vst [vmem:[%s467] ss:$9 sm:$0xff] %v365
    %560 = vst [vmem:[%s469] ss:$9 sm:$0xff] %v369
    %v561 = vld [vmem:[#allocation1] sm:$0xff]
    %v562 = vld [vmem:[#allocation1 + $0x9] sm:$0xff]
    %v563 = vld [vmem:[#allocation1 + $0x12] sm:$0xff]
    %565 = vst [vmem:[#allocation1] ss:$9 sm:$0xff] %v373
    %566 = vst [vmem:[%s452] ss:$9 sm:$0xff] %v377
    %568 = vst [vmem:[%s455] ss:$9 sm:$0xff] %v381
    %570 = vst [vmem:[%s458] ss:$9 sm:$0xff] %v385
    %572 = vst [vmem:[%s461] ss:$9 sm:$0xff] %v389
    %574 = vst [vmem:[%s464] ss:$9 sm:$0xff] %v393
    %576 = vst [vmem:[%s467] ss:$9 sm:$0xff] %v397
    %578 = vst [vmem:[%s469] ss:$9 sm:$0xff] %v401
    %v579 = vld [vmem:[#allocation1] sm:$0xff]
    %v580 = vld [vmem:[#allocation1 + $0x9] sm:$0xff]
    %v581 = vld [vmem:[#allocation1 + $0x12] sm:$0xff]
    %v651 = vunpack.c.l.b16 %v402
    %v652 = vunpack.c.l.b16 %v403
    %v653 = vunpack.c.l.b16 %v404
    %v654 = vunpack.c.l.b16 %v405
    %v655 = vunpack.c.l.b16 %v406
    %v656 = vunpack.c.l.b16 %v407
    %v657 = vunpack.c.l.b16 %v408
    %v658 = vunpack.c.l.b16 %v409
    %v659 = vunpack.c.l.b16 %v410
    %v660 = vunpack.c.l.b16 %v411
    %v661 = vunpack.c.l.b16 %v412
    %v662 = vunpack.c.l.b16 %v413
    %v663 = vunpack.c.l.b16 %v414
    %v664 = vunpack.c.l.b16 %v415
    %v665 = vunpack.c.l.b16 %v416
    %v666 = vunpack.c.l.b16 %v417
    %v667 = vunpack.c.l.b16 %v418
    %v668 = vunpack.c.l.b16 %v419
    %v669 = vunpack.c.l.b16 %v420
    %v670 = vunpack.c.l.b16 %v421
    %v671 = vunpack.c.l.b16 %v422
    %v672 = vunpack.c.l.b16 %v423
    %v673 = vunpack.c.l.b16 %v424
    %v674 = vunpack.c.l.b16 %v425
    %v675 = vunpack.c.l.b16 %v426
    %v676 = vunpack.c.l.b16 %v427
    %v677 = vunpack.c.l.b16 %v428
    %v678 = vunpack.c.l.b16 %v429
    %v679 = vunpack.c.l.b16 %v430
    %v680 = vunpack.c.l.b16 %v431
    %v681 = vunpack.c.l.b16 %v432
    %v682 = vunpack.c.l.b16 %v433
    %v683 = vunpack.c.l.b16 %v434
    %v684 = vunpack.c.l.b16 %v435
    %v685 = vunpack.c.l.b16 %v436
    %v686 = vunpack.c.l.b16 %v437
    %v687 = vunpack.c.l.b16 %v438
    %v688 = vunpack.c.l.b16 %v439
    %v689 = vunpack.c.l.b16 %v440
    %v690 = vunpack.c.l.b16 %v441
    %v691 = vunpack.c.l.b16 %v442
    %v692 = vunpack.c.l.b16 %v443
    %v693 = vunpack.c.l.b16 %v444
    %v694 = vunpack.c.l.b16 %v445
    %v695 = vunpack.c.l.b16 %v446
    %v696 = vunpack.c.l.b16 %v447
    %v697 = vunpack.c.l.b16 %v448
    %v698 = vunpack.c.l.b16 %v449
    %v699 = vpack.c.b16 %v652, %v651
    %v700 = vpack.c.b16 %v654, %v653
    %v701 = vpack.c.b16 %v656, %v655
    %v702 = vpack.c.b16 %v658, %v657
    %v703 = vpack.c.b16 %v660, %v659
    %v704 = vpack.c.b16 %v662, %v661
    %v705 = vpack.c.b16 %v664, %v663
    %v706 = vpack.c.b16 %v666, %v665
    %v707 = vpack.c.b16 %v668, %v667
    %v708 = vpack.c.b16 %v670, %v669
    %v709 = vpack.c.b16 %v672, %v671
    %v710 = vpack.c.b16 %v674, %v673
    %v711 = vpack.c.b16 %v676, %v675
    %v712 = vpack.c.b16 %v678, %v677
    %v713 = vpack.c.b16 %v680, %v679
    %v714 = vpack.c.b16 %v682, %v681
    %v715 = vpack.c.b16 %v684, %v683
    %v716 = vpack.c.b16 %v686, %v685
    %v717 = vpack.c.b16 %v688, %v687
    %v718 = vpack.c.b16 %v690, %v689
    %v719 = vpack.c.b16 %v692, %v691
    %v720 = vpack.c.b16 %v694, %v693
    %v721 = vpack.c.b16 %v696, %v695
    %v722 = vpack.c.b16 %v698, %v697
    %747 = vmatpush.bf16.msra.mxu0 %v706
    %748 = vmatpush.bf16.msra.mxu0 %v705
    %749 = vmatpush.bf16.msra.mxu0 %v704
    %750 = vmatpush.bf16.msra.mxu0 %v703
    %751 = vmatpush.bf16.msra.mxu0 %v702
    %752 = vmatpush.bf16.msra.mxu0 %v701
    %753 = vmatpush.bf16.msra.mxu0 %v700
    %754 = vmatpush.bf16.msra.mxu0 %v699
    %755 = vmatmul.bf16.gmra.mxu0 %v471
    %v756 = vpop.f32.mrf.mxu0
    %v757 = vadd.f32 0.0, %v756
    %v758 = vpop.f32.mrf.mxu0
    %v759 = vadd.f32 0.0, %v758
    %760 = vmatmul.bf16.gmra.mxu0 %v489
    %v761 = vpop.f32.mrf.mxu0
    %v762 = vadd.f32 0.0, %v761
    %v763 = vpop.f32.mrf.mxu0
    %v764 = vadd.f32 0.0, %v763
    %765 = vmatmul.bf16.gmra.mxu0 %v507
    %v766 = vpop.f32.mrf.mxu0
    %v767 = vadd.f32 0.0, %v766
    %v768 = vpop.f32.mrf.mxu0
    %v769 = vadd.f32 0.0, %v768
    %770 = vmatmul.bf16.gmra.mxu0 %v525
    %v771 = vpop.f32.mrf.mxu0
    %v772 = vadd.f32 0.0, %v771
    %v773 = vpop.f32.mrf.mxu0
    %v774 = vadd.f32 0.0, %v773
    %775 = vmatmul.bf16.gmra.mxu0 %v543
    %v776 = vpop.f32.mrf.mxu0
    %v777 = vadd.f32 0.0, %v776
    %v778 = vpop.f32.mrf.mxu0
    %v779 = vadd.f32 0.0, %v778
    %780 = vmatmul.bf16.gmra.mxu0 %v561
    %v781 = vpop.f32.mrf.mxu0
    %v782 = vadd.f32 0.0, %v781
    %v783 = vpop.f32.mrf.mxu0
    %v784 = vadd.f32 0.0, %v783
    %785 = vmatmul.bf16.gmra.mxu0 %v579
    %v786 = vpop.f32.mrf.mxu0
    %v787 = vadd.f32 0.0, %v786
    %v788 = vpop.f32.mrf.mxu0
    %v789 = vadd.f32 0.0, %v788
    %790 = vdwg.mxu0
    %791 = vmatpush.bf16.msra.mxu0 %v714
    %792 = vmatpush.bf16.msra.mxu0 %v713
    %793 = vmatpush.bf16.msra.mxu0 %v712
    %794 = vmatpush.bf16.msra.mxu0 %v711
    %795 = vmatpush.bf16.msra.mxu0 %v710
    %796 = vmatpush.bf16.msra.mxu0 %v709
    %797 = vmatpush.bf16.msra.mxu0 %v708
    %798 = vmatpush.bf16.msra.mxu0 %v707
    %799 = vmatmul.bf16.gmra.mxu0 %v472
    %v800 = vpop.f32.mrf.mxu0
    %v801 = vadd.f32 %v757, %v800
    %v802 = vpop.f32.mrf.mxu0
    %v803 = vadd.f32 %v759, %v802
    %804 = vmatmul.bf16.gmra.mxu0 %v490
    %v805 = vpop.f32.mrf.mxu0
    %v806 = vadd.f32 %v762, %v805
    %v807 = vpop.f32.mrf.mxu0
    %v808 = vadd.f32 %v764, %v807
    %809 = vmatmul.bf16.gmra.mxu0 %v508
    %v810 = vpop.f32.mrf.mxu0
    %v811 = vadd.f32 %v767, %v810
    %v812 = vpop.f32.mrf.mxu0
    %v813 = vadd.f32 %v769, %v812
    %814 = vmatmul.bf16.gmra.mxu0 %v526
    %v815 = vpop.f32.mrf.mxu0
    %v816 = vadd.f32 %v772, %v815
    %v817 = vpop.f32.mrf.mxu0
    %v818 = vadd.f32 %v774, %v817
    %819 = vmatmul.bf16.gmra.mxu0 %v544
    %v820 = vpop.f32.mrf.mxu0
    %v821 = vadd.f32 %v777, %v820
    %v822 = vpop.f32.mrf.mxu0
    %v823 = vadd.f32 %v779, %v822
    %824 = vmatmul.bf16.gmra.mxu0 %v562
    %v825 = vpop.f32.mrf.mxu0
    %v826 = vadd.f32 %v782, %v825
    %v827 = vpop.f32.mrf.mxu0
    %v828 = vadd.f32 %v784, %v827
    %829 = vmatmul.bf16.gmra.mxu0 %v580
    %v830 = vpop.f32.mrf.mxu0
    %v831 = vadd.f32 %v787, %v830
    %v832 = vpop.f32.mrf.mxu0
    %v833 = vadd.f32 %v789, %v832
    %834 = vdwg.mxu0
    %835 = vmatpush.bf16.msra.mxu0 %v722
    %836 = vmatpush.bf16.msra.mxu0 %v721
    %837 = vmatpush.bf16.msra.mxu0 %v720
    %838 = vmatpush.bf16.msra.mxu0 %v719
    %839 = vmatpush.bf16.msra.mxu0 %v718
    %840 = vmatpush.bf16.msra.mxu0 %v717
    %841 = vmatpush.bf16.msra.mxu0 %v716
    %842 = vmatpush.bf16.msra.mxu0 %v715
    %843 = vmatmul.bf16.gmra.mxu0 %v473
    %v844 = vpop.f32.mrf.mxu0
    %v845 = vadd.f32 %v801, %v844
    %v846 = vpop.f32.mrf.mxu0
    %v847 = vadd.f32 %v803, %v846
    %848 = vmatmul.bf16.gmra.mxu0 %v491
    %v849 = vpop.f32.mrf.mxu0
    %v850 = vadd.f32 %v806, %v849
    %v851 = vpop.f32.mrf.mxu0
    %v852 = vadd.f32 %v808, %v851
    %853 = vmatmul.bf16.gmra.mxu0 %v509
    %v854 = vpop.f32.mrf.mxu0
    %v855 = vadd.f32 %v811, %v854
    %v856 = vpop.f32.mrf.mxu0
    %v857 = vadd.f32 %v813, %v856
    %858 = vmatmul.bf16.gmra.mxu0 %v527
    %v859 = vpop.f32.mrf.mxu0
    %v860 = vadd.f32 %v816, %v859
    %v861 = vpop.f32.mrf.mxu0
    %v862 = vadd.f32 %v818, %v861
    %863 = vmatmul.bf16.gmra.mxu0 %v545
    %v864 = vpop.f32.mrf.mxu0
    %v865 = vadd.f32 %v821, %v864
    %v866 = vpop.f32.mrf.mxu0
    %v867 = vadd.f32 %v823, %v866
    %868 = vmatmul.bf16.gmra.mxu0 %v563
    %v869 = vpop.f32.mrf.mxu0
    %v870 = vadd.f32 %v826, %v869
    %v871 = vpop.f32.mrf.mxu0
    %v872 = vadd.f32 %v828, %v871
    %873 = vmatmul.bf16.gmra.mxu0 %v581
    %v874 = vpop.f32.mrf.mxu0
    %v875 = vadd.f32 %v831, %v874
    %v876 = vpop.f32.mrf.mxu0
    %v877 = vadd.f32 %v833, %v876
    %878 = vdwg.mxu0
    %v893 = vrot.slane %v845, 2
    %v894 = vrot.slane %v845, 4
    %v895 = vrot.slane %v845, 6
    %v896 = vrot.slane %v847, 2
    %v897 = vrot.slane %v847, 4
    %v898 = vrot.slane %v847, 6
    %v899 = vrot.slane %v850, 2
    %v900 = vrot.slane %v850, 4
    %v901 = vrot.slane %v850, 6
    %v902 = vrot.slane %v852, 2
    %v903 = vrot.slane %v852, 4
    %v904 = vrot.slane %v852, 6
    %v905 = vrot.slane %v855, 2
    %v906 = vrot.slane %v855, 4
    %v907 = vrot.slane %v855, 6
    %v908 = vrot.slane %v857, 2
    %v909 = vrot.slane %v857, 4
    %v910 = vrot.slane %v857, 6
    %v911 = vrot.slane %v860, 2
    %v912 = vrot.slane %v860, 4
    %v913 = vrot.slane %v860, 6
    %v914 = vrot.slane %v862, 2
    %v915 = vrot.slane %v862, 4
    %v916 = vrot.slane %v862, 6
    %v917 = vrot.slane %v865, 2
    %v918 = vrot.slane %v865, 4
    %v919 = vrot.slane %v865, 6
    %v920 = vrot.slane %v867, 2
    %v921 = vrot.slane %v867, 4
    %v922 = vrot.slane %v867, 6
    %v923 = vrot.slane %v870, 2
    %v924 = vrot.slane %v870, 4
    %v925 = vrot.slane %v870, 6
    %v926 = vrot.slane %v872, 2
    %v927 = vrot.slane %v872, 4
    %v928 = vrot.slane %v872, 6
    %v929 = vrot.slane %v875, 2
    %v930 = vrot.slane %v875, 4
    %v931 = vrot.slane %v875, 6
    %v932 = vrot.slane %v877, 2
    %v933 = vrot.slane %v877, 4
    %v934 = vrot.slane %v877, 6
    %v977 = vld [vmem:[%s2] sm:$0x1]
    %v979 = vperm.slane %v977, 0
    %v981 = vrot.slane %v979, 2
    %v982 = vrot.slane %v979, 4
    %v983 = vrot.slane %v979, 6
    %v987 = vadd.f32 %v845, %v979
    %v988 = vadd.f32 %v893, %v981
    %v989 = vadd.f32 %v894, %v982
    %v990 = vadd.f32 %v895, %v983
    %v991 = vadd.f32 %v847, %v979
    %v992 = vadd.f32 %v896, %v981
    %v993 = vadd.f32 %v897, %v982
    %v994 = vadd.f32 %v898, %v979
    %v995 = vadd.f32 %v850, %v981
    %v996 = vadd.f32 %v899, %v982
    %v997 = vadd.f32 %v900, %v983
    %v998 = vadd.f32 %v901, %v979
    %v999 = vadd.f32 %v852, %v981
    %v1000 = vadd.f32 %v902, %v982
    %v1001 = vadd.f32 %v903, %v979
    %v1002 = vadd.f32 %v904, %v981
    %v1003 = vadd.f32 %v855, %v982
    %v1004 = vadd.f32 %v905, %v983
    %v1005 = vadd.f32 %v906, %v979
    %v1006 = vadd.f32 %v907, %v981
    %v1007 = vadd.f32 %v857, %v982
    %v1008 = vadd.f32 %v908, %v979
    %v1009 = vadd.f32 %v909, %v981
    %v1010 = vadd.f32 %v910, %v982
    %v1011 = vadd.f32 %v860, %v983
    %v1012 = vadd.f32 %v911, %v979
    %v1013 = vadd.f32 %v912, %v981
    %v1014 = vadd.f32 %v913, %v982
    %v1015 = vadd.f32 %v862, %v979
    %v1016 = vadd.f32 %v914, %v981
    %v1017 = vadd.f32 %v915, %v982
    %v1018 = vadd.f32 %v916, %v983
    %v1019 = vadd.f32 %v865, %v979
    %v1020 = vadd.f32 %v917, %v981
    %v1021 = vadd.f32 %v918, %v982
    %v1022 = vadd.f32 %v919, %v979
    %v1023 = vadd.f32 %v867, %v981
    %v1024 = vadd.f32 %v920, %v982
    %v1025 = vadd.f32 %v921, %v983
    %v1026 = vadd.f32 %v922, %v979
    %v1027 = vadd.f32 %v870, %v981
    %v1028 = vadd.f32 %v923, %v982
    %v1029 = vadd.f32 %v924, %v979
    %v1030 = vadd.f32 %v925, %v981
    %v1031 = vadd.f32 %v872, %v982
    %v1032 = vadd.f32 %v926, %v983
    %v1033 = vadd.f32 %v927, %v979
    %v1034 = vadd.f32 %v928, %v981
    %v1035 = vadd.f32 %v875, %v982
    %v1036 = vadd.f32 %v929, %v979
    %v1037 = vadd.f32 %v930, %v981
    %v1038 = vadd.f32 %v931, %v982
    %v1039 = vadd.f32 %v877, %v983
    %v1040 = vadd.f32 %v932, %v979
    %v1041 = vadd.f32 %v933, %v981
    %v1042 = vadd.f32 %v934, %v982
    %1099 = vst [vmem:[#allocation1] ss:$4 sm:$0xff] %v987
    %s1100 = scalar_lea.vmem [#allocation1], 1
    %1101 = vst [vmem:[%s1100] ss:$4 sm:$0xff] %v988
    %s1102 = scalar_lea.vmem [#allocation1], 2
    %1103 = vst [vmem:[%s1102] ss:$4 sm:$0xff] %v989
    %s1104 = scalar_lea.vmem [#allocation1], 3
    %1105 = vst [vmem:[%s1104] ss:$4 sm:$0xff] %v990
    %s1106 = scalar_lea.vmem [#allocation1], 32
    %1107 = vst [vmem:[%s1106] ss:$4 sm:$0xff] %v991
    %s1108 = scalar_lea.vmem [#allocation1], 33
    %1109 = vst [vmem:[%s1108] ss:$4 sm:$0xff] %v992
    %s1110 = scalar_lea.vmem [#allocation1], 34
    %1111 = vst [vmem:[%s1110] ss:$4 sm:$0xff] %v993
    %v1112 = vld.sshfl [vmem:[#allocation1] sm:$0xff pattern:$0x73625140]
    %v1113 = vld.sshfl [vmem:[#allocation1 + $0x20] sm:$0xff pattern:$0x73625140]
    %1114 = vst [vmem:[#allocation1] ss:$4 sm:$0xff] %v994
    %1115 = vst [vmem:[%s1100] ss:$4 sm:$0xff] %v995
    %1116 = vst [vmem:[%s1102] ss:$4 sm:$0xff] %v996
    %1117 = vst [vmem:[%s1104] ss:$4 sm:$0xff] %v997
    %1118 = vst [vmem:[%s1106] ss:$4 sm:$0xff] %v998
    %1119 = vst [vmem:[%s1108] ss:$4 sm:$0xff] %v999
    %1120 = vst [vmem:[%s1110] ss:$4 sm:$0xff] %v1000
    %v1121 = vld.sshfl [vmem:[#allocation1] sm:$0xff pattern:$0x73625140]
    %v1122 = vld.sshfl [vmem:[#allocation1 + $0x20] sm:$0xff pattern:$0x73625140]
    %1123 = vst [vmem:[#allocation1] ss:$4 sm:$0xff] %v1001
    %1124 = vst [vmem:[%s1100] ss:$4 sm:$0xff] %v1002
    %1125 = vst [vmem:[%s1102] ss:$4 sm:$0xff] %v1003
    %1126 = vst [vmem:[%s1104] ss:$4 sm:$0xff] %v1004
    %1127 = vst [vmem:[%s1106] ss:$4 sm:$0xff] %v1005
    %1128 = vst [vmem:[%s1108] ss:$4 sm:$0xff] %v1006
    %1129 = vst [vmem:[%s1110] ss:$4 sm:$0xff] %v1007
    %v1130 = vld.sshfl [vmem:[#allocation1] sm:$0xff pattern:$0x73625140]
    %v1131 = vld.sshfl [vmem:[#allocation1 + $0x20] sm:$0xff pattern:$0x73625140]
    %1132 = vst [vmem:[#allocation1] ss:$4 sm:$0xff] %v1008
    %1133 = vst [vmem:[%s1100] ss:$4 sm:$0xff] %v1009
    %1134 = vst [vmem:[%s1102] ss:$4 sm:$0xff] %v1010
    %1135 = vst [vmem:[%s1104] ss:$4 sm:$0xff] %v1011
    %1136 = vst [vmem:[%s1106] ss:$4 sm:$0xff] %v1012
    %1137 = vst [vmem:[%s1108] ss:$4 sm:$0xff] %v1013
    %1138 = vst [vmem:[%s1110] ss:$4 sm:$0xff] %v1014
    %v1139 = vld.sshfl [vmem:[#allocation1] sm:$0xff pattern:$0x73625140]
    %v1140 = vld.sshfl [vmem:[#allocation1 + $0x20] sm:$0xff pattern:$0x73625140]
    %1141 = vst [vmem:[#allocation1] ss:$4 sm:$0xff] %v1015
    %1142 = vst [vmem:[%s1100] ss:$4 sm:$0xff] %v1016
    %1143 = vst [vmem:[%s1102] ss:$4 sm:$0xff] %v1017
    %1144 = vst [vmem:[%s1104] ss:$4 sm:$0xff] %v1018
    %1145 = vst [vmem:[%s1106] ss:$4 sm:$0xff] %v1019
    %1146 = vst [vmem:[%s1108] ss:$4 sm:$0xff] %v1020
    %1147 = vst [vmem:[%s1110] ss:$4 sm:$0xff] %v1021
    %v1148 = vld.sshfl [vmem:[#allocation1] sm:$0xff pattern:$0x73625140]
    %v1149 = vld.sshfl [vmem:[#allocation1 + $0x20] sm:$0xff pattern:$0x73625140]
    %1150 = vst [vmem:[#allocation1] ss:$4 sm:$0xff] %v1022
    %1151 = vst [vmem:[%s1100] ss:$4 sm:$0xff] %v1023
    %1152 = vst [vmem:[%s1102] ss:$4 sm:$0xff] %v1024
    %1153 = vst [vmem:[%s1104] ss:$4 sm:$0xff] %v1025
    %1154 = vst [vmem:[%s1106] ss:$4 sm:$0xff] %v1026
    %1155 = vst [vmem:[%s1108] ss:$4 sm:$0xff] %v1027
    %1156 = vst [vmem:[%s1110] ss:$4 sm:$0xff] %v1028
    %v1157 = vld.sshfl [vmem:[#allocation1] sm:$0xff pattern:$0x73625140]
    %v1158 = vld.sshfl [vmem:[#allocation1 + $0x20] sm:$0xff pattern:$0x73625140]
    %1159 = vst [vmem:[#allocation1] ss:$4 sm:$0xff] %v1029
    %1160 = vst [vmem:[%s1100] ss:$4 sm:$0xff] %v1030
    %1161 = vst [vmem:[%s1102] ss:$4 sm:$0xff] %v1031
    %1162 = vst [vmem:[%s1104] ss:$4 sm:$0xff] %v1032
    %1163 = vst [vmem:[%s1106] ss:$4 sm:$0xff] %v1033
    %1164 = vst [vmem:[%s1108] ss:$4 sm:$0xff] %v1034
    %1165 = vst [vmem:[%s1110] ss:$4 sm:$0xff] %v1035
    %v1166 = vld.sshfl [vmem:[#allocation1] sm:$0xff pattern:$0x73625140]
    %v1167 = vld.sshfl [vmem:[#allocation1 + $0x20] sm:$0xff pattern:$0x73625140]
    %1168 = vst [vmem:[#allocation1] ss:$4 sm:$0xff] %v1036
    %1169 = vst [vmem:[%s1100] ss:$4 sm:$0xff] %v1037
    %1170 = vst [vmem:[%s1102] ss:$4 sm:$0xff] %v1038
    %1171 = vst [vmem:[%s1104] ss:$4 sm:$0xff] %v1039
    %1172 = vst [vmem:[%s1106] ss:$4 sm:$0xff] %v1040
    %1173 = vst [vmem:[%s1108] ss:$4 sm:$0xff] %v1041
    %1174 = vst [vmem:[%s1110] ss:$4 sm:$0xff] %v1042
    %v1175 = vld.sshfl [vmem:[#allocation1] sm:$0xff pattern:$0x73625140]
    %v1176 = vld.sshfl [vmem:[#allocation1 + $0x20] sm:$0xff pattern:$0x73625140]
    %v1193 = vpack.c.bf16 %v1112, %v1112
    %v1194 = vpack.c.bf16 %v1113, %v1113
    %v1195 = vpack.c.bf16 %v1121, %v1121
    %v1196 = vpack.c.bf16 %v1122, %v1122
    %v1197 = vpack.c.bf16 %v1130, %v1130
    %v1198 = vpack.c.bf16 %v1131, %v1131
    %v1199 = vpack.c.bf16 %v1139, %v1139
    %v1200 = vpack.c.bf16 %v1140, %v1140
    %v1201 = vpack.c.bf16 %v1148, %v1148
    %v1202 = vpack.c.bf16 %v1149, %v1149
    %v1203 = vpack.c.bf16 %v1157, %v1157
    %v1204 = vpack.c.bf16 %v1158, %v1158
    %v1205 = vpack.c.bf16 %v1166, %v1166
    %v1206 = vpack.c.bf16 %v1167, %v1167
    %v1207 = vpack.c.bf16 %v1175, %v1175
    %v1208 = vpack.c.bf16 %v1176, %v1176
    %v1225 = vunpack.c.l.b16 %v1193
    %v1226 = vunpack.c.l.b16 %v1194
    %v1227 = vunpack.c.l.b16 %v1195
    %v1228 = vunpack.c.l.b16 %v1196
    %v1229 = vunpack.c.l.b16 %v1197
    %v1230 = vunpack.c.l.b16 %v1198
    %v1231 = vunpack.c.l.b16 %v1199
    %v1232 = vunpack.c.l.b16 %v1200
    %v1233 = vunpack.c.l.b16 %v1201
    %v1234 = vunpack.c.l.b16 %v1202
    %v1235 = vunpack.c.l.b16 %v1203
    %v1236 = vunpack.c.l.b16 %v1204
    %v1237 = vunpack.c.l.b16 %v1205
    %v1238 = vunpack.c.l.b16 %v1206
    %v1239 = vunpack.c.l.b16 %v1207
    %v1240 = vunpack.c.l.b16 %v1208
    %v1241 = vpack.c.b16 %v1226, %v1225
    %v1242 = vpack.c.b16 %v1228, %v1227
    %v1243 = vpack.c.b16 %v1230, %v1229
    %v1244 = vpack.c.b16 %v1232, %v1231
    %v1245 = vpack.c.b16 %v1234, %v1233
    %v1246 = vpack.c.b16 %v1236, %v1235
    %v1247 = vpack.c.b16 %v1238, %v1237
    %v1248 = vpack.c.b16 %v1240, %v1239
    %v1250 = vshrl.u32 %v1241, 16
    %v1252 = vshll.u32 %v1241, 16
    %v1254 = vrot.slane %v1252, 1
    %v1255 = vor.u32 %v1250, %v1254
    %v1257 = vshrl.u32 %v1242, 16
    %v1259 = vshll.u32 %v1242, 16
    %v1261 = vrot.slane %v1259, 1
    %v1262 = vor.u32 %v1257, %v1261
    %v1264 = vshrl.u32 %v1243, 16
    %v1266 = vshll.u32 %v1243, 16
    %v1268 = vrot.slane %v1266, 1
    %v1269 = vor.u32 %v1264, %v1268
    %v1271 = vshrl.u32 %v1244, 16
    %v1273 = vshll.u32 %v1244, 16
    %v1275 = vrot.slane %v1273, 1
    %v1276 = vor.u32 %v1271, %v1275
    %v1278 = vshrl.u32 %v1245, 16
    %v1280 = vshll.u32 %v1245, 16
    %v1282 = vrot.slane %v1280, 1
    %v1283 = vor.u32 %v1278, %v1282
    %v1285 = vshrl.u32 %v1246, 16
    %v1287 = vshll.u32 %v1246, 16
    %v1289 = vrot.slane %v1287, 1
    %v1290 = vor.u32 %v1285, %v1289
    %v1292 = vshrl.u32 %v1247, 16
    %v1294 = vshll.u32 %v1247, 16
    %v1296 = vrot.slane %v1294, 1
    %v1297 = vor.u32 %v1292, %v1296
    %v1299 = vshrl.u32 %v1248, 16
    %v1301 = vshll.u32 %v1248, 16
    %v1303 = vrot.slane %v1301, 1
    %v1304 = vor.u32 %v1299, %v1303
    %1305 = vrot.lane.b32.xlu0 %v1255, 8
    %v1306 = vpop.permute.xlu0 %1305
    %1307 = vrot.lane.b32.xlu0 %v1262, 8
    %v1308 = vpop.permute.xlu0 %1307
    %1309 = vrot.lane.b32.xlu0 %v1269, 8
    %v1310 = vpop.permute.xlu0 %1309
    %1311 = vrot.lane.b32.xlu0 %v1276, 8
    %v1312 = vpop.permute.xlu0 %1311
    %1313 = vrot.lane.b32.xlu0 %v1283, 8
    %v1314 = vpop.permute.xlu0 %1313
    %1315 = vrot.lane.b32.xlu0 %v1290, 8
    %v1316 = vpop.permute.xlu0 %1315
    %1317 = vrot.lane.b32.xlu0 %v1297, 8
    %v1318 = vpop.permute.xlu0 %1317
    %1319 = vrot.lane.b32.xlu0 %v1304, 8
    %v1320 = vpop.permute.xlu0 %1319
    %v1321 = vrot.slane %v1241, 1
    %v1322 = vrot.slane %v1242, 1
    %v1323 = vrot.slane %v1243, 1
    %v1324 = vrot.slane %v1244, 1
    %v1325 = vrot.slane %v1245, 1
    %v1326 = vrot.slane %v1246, 1
    %v1327 = vrot.slane %v1247, 1
    %v1328 = vrot.slane %v1248, 1
    %1329 = vrot.lane.b32.xlu0 %v1321, 16
    %v1330 = vpop.permute.xlu0 %1329
    %1331 = vrot.lane.b32.xlu0 %v1322, 16
    %v1332 = vpop.permute.xlu0 %1331
    %1333 = vrot.lane.b32.xlu0 %v1323, 16
    %v1334 = vpop.permute.xlu0 %1333
    %1335 = vrot.lane.b32.xlu0 %v1324, 16
    %v1336 = vpop.permute.xlu0 %1335
    %1337 = vrot.lane.b32.xlu0 %v1325, 16
    %v1338 = vpop.permute.xlu0 %1337
    %1339 = vrot.lane.b32.xlu0 %v1326, 16
    %v1340 = vpop.permute.xlu0 %1339
    %1341 = vrot.lane.b32.xlu0 %v1327, 16
    %v1342 = vpop.permute.xlu0 %1341
    %1343 = vrot.lane.b32.xlu0 %v1328, 16
    %v1344 = vpop.permute.xlu0 %1343
    %vm1345 = vcmask 64512
    %v1347 = vsel %vm1345, %v1241, %v1306
    %v1349 = vsel %vm1345, %v1242, %v1308
    %v1351 = vsel %vm1345, %v1243, %v1310
    %v1353 = vsel %vm1345, %v1244, %v1312
    %v1355 = vsel %vm1345, %v1245, %v1314
    %v1357 = vsel %vm1345, %v1246, %v1316
    %v1359 = vsel %vm1345, %v1247, %v1318
    %v1361 = vsel %vm1345, %v1248, %v1320
    %vm1362 = vcmask 130048
    %v1364 = vsel %vm1362, %v1347, %v1330
    %v1366 = vsel %vm1362, %v1349, %v1332
    %v1368 = vsel %vm1362, %v1351, %v1334
    %v1370 = vsel %vm1362, %v1353, %v1336
    %v1372 = vsel %vm1362, %v1355, %v1338
    %v1374 = vsel %vm1362, %v1357, %v1340
    %v1376 = vsel %vm1362, %v1359, %v1342
    %v1378 = vsel %vm1362, %v1361, %v1344
    %v1387 = vrot.slane %v1364, 2
    %v1388 = vrot.slane %v1364, 4
    %v1389 = vrot.slane %v1366, 2
    %v1390 = vrot.slane %v1366, 4
    %v1391 = vrot.slane %v1368, 2
    %v1392 = vrot.slane %v1368, 4
    %v1393 = vrot.slane %v1370, 2
    %v1394 = vrot.slane %v1370, 4
    %v1395 = vrot.slane %v1372, 2
    %v1396 = vrot.slane %v1372, 4
    %v1397 = vrot.slane %v1374, 2
    %v1398 = vrot.slane %v1374, 4
    %v1399 = vrot.slane %v1376, 2
    %v1400 = vrot.slane %v1376, 4
    %v1401 = vrot.slane %v1378, 2
    %v1402 = vrot.slane %v1378, 4
    %v1403 = vld [vmem:[%s3] sm:$0xf]
    %v1404 = vld [vmem:[%s3 + $0x4] sm:$0xf]
    %v1405 = vld [vmem:[%s3 + $0x8] sm:$0xf]
    %1406 = vst [vmem:[#allocation1] ss:$4 sm:$0xff] %v1364
    %s1408 = scalar_lea.vmem [#allocation1], 1
    %1409 = vst [vmem:[%s1408] ss:$4 sm:$0xff] %v1387
    %s1411 = scalar_lea.vmem [#allocation1], 2
    %1412 = vst [vmem:[%s1411] ss:$4 sm:$0xff] %v1388
    %s1413 = scalar_lea.vmem [#allocation1], 3
    %1414 = vst [vmem:[%s1413] ss:$4 sm:$0xff] %v1366
    %s1416 = scalar_lea.vmem [#allocation1], 32
    %1417 = vst [vmem:[%s1416] ss:$4 sm:$0xff] %v1389
    %s1419 = scalar_lea.vmem [#allocation1], 33
    %1420 = vst [vmem:[%s1419] ss:$4 sm:$0xff] %v1390
    %s1421 = scalar_lea.vmem [#allocation1], 34
    %1422 = vst [vmem:[%s1421] ss:$4 sm:$0xff] %v1368
    %s1424 = scalar_lea.vmem [#allocation1], 35
    %1425 = vst [vmem:[%s1424] ss:$4 sm:$0xff] %v1391
    %v1426 = vld.sshfl [vmem:[#allocation1] sm:$0xff pattern:$0x73625140]
    %v1427 = vld.sshfl [vmem:[#allocation1 + $0x20] sm:$0xff pattern:$0x73625140]
    %1429 = vst [vmem:[#allocation1] ss:$4 sm:$0xff] %v1392
    %1430 = vst [vmem:[%s1408] ss:$4 sm:$0xff] %v1370
    %1432 = vst [vmem:[%s1411] ss:$4 sm:$0xff] %v1393
    %1434 = vst [vmem:[%s1413] ss:$4 sm:$0xff] %v1394
    %1435 = vst [vmem:[%s1416] ss:$4 sm:$0xff] %v1372
    %1437 = vst [vmem:[%s1419] ss:$4 sm:$0xff] %v1395
    %1439 = vst [vmem:[%s1421] ss:$4 sm:$0xff] %v1396
    %1440 = vst [vmem:[%s1424] ss:$4 sm:$0xff] %v1374
    %v1441 = vld.sshfl [vmem:[#allocation1] sm:$0xff pattern:$0x73625140]
    %v1442 = vld.sshfl [vmem:[#allocation1 + $0x20] sm:$0xff pattern:$0x73625140]
    %1444 = vst [vmem:[#allocation1] ss:$4 sm:$0xff] %v1397
    %1446 = vst [vmem:[%s1408] ss:$4 sm:$0xff] %v1398
    %1447 = vst [vmem:[%s1411] ss:$4 sm:$0xff] %v1376
    %1449 = vst [vmem:[%s1413] ss:$4 sm:$0xff] %v1399
    %1451 = vst [vmem:[%s1416] ss:$4 sm:$0xff] %v1400
    %1452 = vst [vmem:[%s1419] ss:$4 sm:$0xff] %v1378
    %1454 = vst [vmem:[%s1421] ss:$4 sm:$0xff] %v1401
    %1456 = vst [vmem:[%s1424] ss:$4 sm:$0xff] %v1402
    %v1457 = vld.sshfl [vmem:[#allocation1] sm:$0xff pattern:$0x73625140]
    %v1458 = vld.sshfl [vmem:[#allocation1 + $0x20] sm:$0xff pattern:$0x73625140]
    %v1462 = vunpack.c.l.b16 %v1403
    %v1463 = vunpack.c.l.b16 %v1404
    %v1464 = vunpack.c.l.b16 %v1405
    %v1465 = vpack.c.b16 %v1463, %v1462
    %v1466 = vpack.c.b16 %v1464, %v1464
    %vm1468 = vcmask 195584
    %v1469 = vsel %vm1468, %v1426, 0
    %v1471 = vsel %vm1468, %v1427, 0
    %v1473 = vsel %vm1468, %v1441, 0
    %v1475 = vsel %vm1468, %v1442, 0
    %v1477 = vsel %vm1468, %v1457, 0
    %v1479 = vsel %vm1468, %v1458, 0
    %vm1481 = vcmask 1043456
    %v1483 = vsel %vm1481, %v1466, 0
    %1485 = vmatpush.bf16.msra.mxu0 0
    %1486 = vmatpush.bf16.msra.mxu0 0
    %1487 = vmatpush.bf16.msra.mxu0 0
    %1488 = vmatpush.bf16.msra.mxu0 0
    %1489 = vmatpush.bf16.msra.mxu0 0
    %1490 = vmatpush.bf16.msra.mxu0 0
    %1491 = vmatpush.bf16.msra.mxu0 %v1483
    %1492 = vmatpush.bf16.msra.mxu0 %v1465
    %1493 = vmatmul.bf16.gmra.mxu0 %v1469
    %v1494 = vpop.f32.mrf.mxu0
    %v1495 = vadd.f32 0.0, %v1494
    %v1496 = vpop.f32.mrf.mxu0
    %v1497 = vadd.f32 0.0, %v1496
    %1498 = vmatmul.bf16.gmra.mxu0 %v1471
    %v1499 = vpop.f32.mrf.mxu0
    %v1500 = vadd.f32 0.0, %v1499
    %v1501 = vpop.f32.mrf.mxu0
    %v1502 = vadd.f32 0.0, %v1501
    %1503 = vmatmul.bf16.gmra.mxu0 %v1473
    %v1504 = vpop.f32.mrf.mxu0
    %v1505 = vadd.f32 0.0, %v1504
    %v1506 = vpop.f32.mrf.mxu0
    %v1507 = vadd.f32 0.0, %v1506
    %1508 = vmatmul.bf16.gmra.mxu0 %v1475
    %v1509 = vpop.f32.mrf.mxu0
    %v1510 = vadd.f32 0.0, %v1509
    %v1511 = vpop.f32.mrf.mxu0
    %v1512 = vadd.f32 0.0, %v1511
    %1513 = vmatmul.bf16.gmra.mxu0 %v1477
    %v1514 = vpop.f32.mrf.mxu0
    %v1515 = vadd.f32 0.0, %v1514
    %v1516 = vpop.f32.mrf.mxu0
    %v1517 = vadd.f32 0.0, %v1516
    %1518 = vmatmul.bf16.gmra.mxu0 %v1479
    %v1519 = vpop.f32.mrf.mxu0
    %v1520 = vadd.f32 0.0, %v1519
    %v1521 = vpop.f32.mrf.mxu0
    %v1522 = vadd.f32 0.0, %v1521
    %1523 = vdwg.mxu0
    %v1536 = vrot.slane %v1495, 4
    %v1537 = vrot.slane %v1497, 4
    %v1538 = vrot.slane %v1500, 4
    %v1539 = vrot.slane %v1502, 4
    %v1540 = vrot.slane %v1505, 4
    %v1541 = vrot.slane %v1507, 4
    %v1542 = vrot.slane %v1510, 4
    %v1543 = vrot.slane %v1512, 4
    %v1544 = vrot.slane %v1515, 4
    %v1545 = vrot.slane %v1517, 4
    %v1546 = vrot.slane %v1520, 4
    %v1547 = vrot.slane %v1522, 4
    %v1560 = vld [vmem:[%s4] sm:$0x1]
    %v1562 = vperm.slane %v1560, 0
    %v1564 = vrot.slane %v1562, 4
    %v1566 = vadd.f32 %v1495, %v1562
    %v1567 = vadd.f32 %v1536, %v1564
    %v1568 = vadd.f32 %v1497, %v1562
    %v1569 = vadd.f32 %v1537, %v1562
    %v1570 = vadd.f32 %v1500, %v1564
    %v1571 = vadd.f32 %v1538, %v1562
    %v1572 = vadd.f32 %v1502, %v1562
    %v1573 = vadd.f32 %v1539, %v1564
    %v1574 = vadd.f32 %v1505, %v1562
    %v1575 = vadd.f32 %v1540, %v1562
    %v1576 = vadd.f32 %v1507, %v1564
    %v1577 = vadd.f32 %v1541, %v1562
    %v1578 = vadd.f32 %v1510, %v1562
    %v1579 = vadd.f32 %v1542, %v1564
    %v1580 = vadd.f32 %v1512, %v1562
    %v1581 = vadd.f32 %v1543, %v1562
    %v1582 = vadd.f32 %v1515, %v1564
    %v1583 = vadd.f32 %v1544, %v1562
    %v1584 = vadd.f32 %v1517, %v1562
    %v1585 = vadd.f32 %v1545, %v1564
    %v1586 = vadd.f32 %v1520, %v1562
    %v1587 = vadd.f32 %v1546, %v1562
    %v1588 = vadd.f32 %v1522, %v1564
    %v1589 = vadd.f32 %v1547, %v1562
    %1614 = vst [vmem:[#allocation1] ss:$2 sm:$0xff] %v1566
    %s1615 = scalar_lea.vmem [#allocation1], 1
    %1616 = vst [vmem:[%s1615] ss:$2 sm:$0xff] %v1567
    %s1617 = scalar_lea.vmem [#allocation1], 16
    %1618 = vst [vmem:[%s1617] ss:$2 sm:$0xff] %v1568
    %v1619 = vld.sshfl [vmem:[#allocation1] sm:$0xff pattern:$0x75316420]
    %v1620 = vld.sshfl [vmem:[#allocation1 + $0x10] sm:$0xff pattern:$0x75316420]
    %s1621 = scalar_lea.vmem [#allocation1], 32
    %1622 = vst [vmem:[%s1621] ss:$2 sm:$0xff] %v1569
    %s1623 = scalar_lea.vmem [#allocation1], 33
    %1624 = vst [vmem:[%s1623] ss:$2 sm:$0xff] %v1570
    %s1625 = scalar_lea.vmem [#allocation1], 48
    %1626 = vst [vmem:[%s1625] ss:$2 sm:$0xff] %v1571
    %v1627 = vld.sshfl [vmem:[#allocation1 + $0x20] sm:$0xff pattern:$0x75316420]
    %v1628 = vld.sshfl [vmem:[#allocation1 + $0x30] sm:$0xff pattern:$0x75316420]
    %1629 = vst [vmem:[#allocation1] ss:$2 sm:$0xff] %v1572
    %1630 = vst [vmem:[%s1615] ss:$2 sm:$0xff] %v1573
    %1631 = vst [vmem:[%s1617] ss:$2 sm:$0xff] %v1574
    %v1632 = vld.sshfl [vmem:[#allocation1] sm:$0xff pattern:$0x75316420]
    %v1633 = vld.sshfl [vmem:[#allocation1 + $0x10] sm:$0xff pattern:$0x75316420]
    %1634 = vst [vmem:[%s1621] ss:$2 sm:$0xff] %v1575
    %1635 = vst [vmem:[%s1623] ss:$2 sm:$0xff] %v1576
    %1636 = vst [vmem:[%s1625] ss:$2 sm:$0xff] %v1577
    %v1637 = vld.sshfl [vmem:[#allocation1 + $0x20] sm:$0xff pattern:$0x75316420]
    %v1638 = vld.sshfl [vmem:[#allocation1 + $0x30] sm:$0xff pattern:$0x75316420]
    %1639 = vst [vmem:[#allocation1] ss:$2 sm:$0xff] %v1578
    %1640 = vst [vmem:[%s1615] ss:$2 sm:$0xff] %v1579
    %1641 = vst [vmem:[%s1617] ss:$2 sm:$0xff] %v1580
    %v1642 = vld.sshfl [vmem:[#allocation1] sm:$0xff pattern:$0x75316420]
    %v1643 = vld.sshfl [vmem:[#allocation1 + $0x10] sm:$0xff pattern:$0x75316420]
    %1644 = vst [vmem:[%s1621] ss:$2 sm:$0xff] %v1581
    %1645 = vst [vmem:[%s1623] ss:$2 sm:$0xff] %v1582
    %1646 = vst [vmem:[%s1625] ss:$2 sm:$0xff] %v1583
    %v1647 = vld.sshfl [vmem:[#allocation1 + $0x20] sm:$0xff pattern:$0x75316420]
    %v1648 = vld.sshfl [vmem:[#allocation1 + $0x30] sm:$0xff pattern:$0x75316420]
    %1649 = vst [vmem:[#allocation1] ss:$2 sm:$0xff] %v1584
    %1650 = vst [vmem:[%s1615] ss:$2 sm:$0xff] %v1585
    %1651 = vst [vmem:[%s1617] ss:$2 sm:$0xff] %v1586
    %v1652 = vld.sshfl [vmem:[#allocation1] sm:$0xff pattern:$0x75316420]
    %v1653 = vld.sshfl [vmem:[#allocation1 + $0x10] sm:$0xff pattern:$0x75316420]
    %1654 = vst [vmem:[%s1621] ss:$2 sm:$0xff] %v1587
    %1655 = vst [vmem:[%s1623] ss:$2 sm:$0xff] %v1588
    %1656 = vst [vmem:[%s1625] ss:$2 sm:$0xff] %v1589
    %v1657 = vld.sshfl [vmem:[#allocation1 + $0x20] sm:$0xff pattern:$0x75316420]
    %v1658 = vld.sshfl [vmem:[#allocation1 + $0x30] sm:$0xff pattern:$0x75316420]
    %v1675 = vpack.c.bf16 %v1619, %v1619
    %v1676 = vpack.c.bf16 %v1620, %v1620
    %v1677 = vpack.c.bf16 %v1627, %v1627
    %v1678 = vpack.c.bf16 %v1628, %v1628
    %v1679 = vpack.c.bf16 %v1632, %v1632
    %v1680 = vpack.c.bf16 %v1633, %v1633
    %v1681 = vpack.c.bf16 %v1637, %v1637
    %v1682 = vpack.c.bf16 %v1638, %v1638
    %v1683 = vpack.c.bf16 %v1642, %v1642
    %v1684 = vpack.c.bf16 %v1643, %v1643
    %v1685 = vpack.c.bf16 %v1647, %v1647
    %v1686 = vpack.c.bf16 %v1648, %v1648
    %v1687 = vpack.c.bf16 %v1652, %v1652
    %v1688 = vpack.c.bf16 %v1653, %v1653
    %v1689 = vpack.c.bf16 %v1657, %v1657
    %v1690 = vpack.c.bf16 %v1658, %v1658
    %v1707 = vunpack.c.l.b16 %v1675
    %v1708 = vunpack.c.l.b16 %v1676
    %v1709 = vunpack.c.l.b16 %v1677
    %v1710 = vunpack.c.l.b16 %v1678
    %v1711 = vunpack.c.l.b16 %v1679
    %v1712 = vunpack.c.l.b16 %v1680
    %v1713 = vunpack.c.l.b16 %v1681
    %v1714 = vunpack.c.l.b16 %v1682
    %v1715 = vunpack.c.l.b16 %v1683
    %v1716 = vunpack.c.l.b16 %v1684
    %v1717 = vunpack.c.l.b16 %v1685
    %v1718 = vunpack.c.l.b16 %v1686
    %v1719 = vunpack.c.l.b16 %v1687
    %v1720 = vunpack.c.l.b16 %v1688
    %v1721 = vunpack.c.l.b16 %v1689
    %v1722 = vunpack.c.l.b16 %v1690
    %v1723 = vpack.c.b16 %v1708, %v1707
    %v1724 = vpack.c.b16 %v1710, %v1709
    %v1725 = vpack.c.b16 %v1712, %v1711
    %v1726 = vpack.c.b16 %v1714, %v1713
    %v1727 = vpack.c.b16 %v1716, %v1715
    %v1728 = vpack.c.b16 %v1718, %v1717
    %v1729 = vpack.c.b16 %v1720, %v1719
    %v1730 = vpack.c.b16 %v1722, %v1721
    %v1732 = vshrl.u32 %v1723, 16
    %v1734 = vshll.u32 %v1723, 16
    %v1736 = vrot.slane %v1734, 1
    %v1737 = vor.u32 %v1732, %v1736
    %v1739 = vshrl.u32 %v1724, 16
    %v1741 = vshll.u32 %v1724, 16
    %v1743 = vrot.slane %v1741, 1
    %v1744 = vor.u32 %v1739, %v1743
    %v1746 = vshrl.u32 %v1725, 16
    %v1748 = vshll.u32 %v1725, 16
    %v1750 = vrot.slane %v1748, 1
    %v1751 = vor.u32 %v1746, %v1750
    %v1753 = vshrl.u32 %v1726, 16
    %v1755 = vshll.u32 %v1726, 16
    %v1757 = vrot.slane %v1755, 1
    %v1758 = vor.u32 %v1753, %v1757
    %v1760 = vshrl.u32 %v1727, 16
    %v1762 = vshll.u32 %v1727, 16
    %v1764 = vrot.slane %v1762, 1
    %v1765 = vor.u32 %v1760, %v1764
    %v1767 = vshrl.u32 %v1728, 16
    %v1769 = vshll.u32 %v1728, 16
    %v1771 = vrot.slane %v1769, 1
    %v1772 = vor.u32 %v1767, %v1771
    %v1774 = vshrl.u32 %v1729, 16
    %v1776 = vshll.u32 %v1729, 16
    %v1778 = vrot.slane %v1776, 1
    %v1779 = vor.u32 %v1774, %v1778
    %v1781 = vshrl.u32 %v1730, 16
    %v1783 = vshll.u32 %v1730, 16
    %v1785 = vrot.slane %v1783, 1
    %v1786 = vor.u32 %v1781, %v1785
    %1787 = vrot.lane.b32.xlu0 %v1737, 16
    %v1788 = vpop.permute.xlu0 %1787
    %1789 = vrot.lane.b32.xlu0 %v1744, 16
    %v1790 = vpop.permute.xlu0 %1789
    %1791 = vrot.lane.b32.xlu0 %v1751, 16
    %v1792 = vpop.permute.xlu0 %1791
    %1793 = vrot.lane.b32.xlu0 %v1758, 16
    %v1794 = vpop.permute.xlu0 %1793
    %1795 = vrot.lane.b32.xlu0 %v1765, 16
    %v1796 = vpop.permute.xlu0 %1795
    %1797 = vrot.lane.b32.xlu0 %v1772, 16
    %v1798 = vpop.permute.xlu0 %1797
    %1799 = vrot.lane.b32.xlu0 %v1779, 16
    %v1800 = vpop.permute.xlu0 %1799
    %1801 = vrot.lane.b32.xlu0 %v1786, 16
    %v1802 = vpop.permute.xlu0 %1801
    %v1803 = vrot.slane %v1723, 1
    %v1804 = vrot.slane %v1724, 1
    %v1805 = vrot.slane %v1725, 1
    %v1806 = vrot.slane %v1726, 1
    %v1807 = vrot.slane %v1727, 1
    %v1808 = vrot.slane %v1728, 1
    %v1809 = vrot.slane %v1729, 1
    %v1810 = vrot.slane %v1730, 1
    %1811 = vrot.lane.b32.xlu0 %v1803, 32
    %v1812 = vpop.permute.xlu0 %1811
    %1813 = vrot.lane.b32.xlu0 %v1804, 32
    %v1814 = vpop.permute.xlu0 %1813
    %1815 = vrot.lane.b32.xlu0 %v1805, 32
    %v1816 = vpop.permute.xlu0 %1815
    %1817 = vrot.lane.b32.xlu0 %v1806, 32
    %v1818 = vpop.permute.xlu0 %1817
    %1819 = vrot.lane.b32.xlu0 %v1807, 32
    %v1820 = vpop.permute.xlu0 %1819
    %1821 = vrot.lane.b32.xlu0 %v1808, 32
    %v1822 = vpop.permute.xlu0 %1821
    %1823 = vrot.lane.b32.xlu0 %v1809, 32
    %v1824 = vpop.permute.xlu0 %1823
    %1825 = vrot.lane.b32.xlu0 %v1810, 32
    %v1826 = vpop.permute.xlu0 %1825
    %v1828 = vsel %vm1362, %v1723, %v1788
    %v1830 = vsel %vm1362, %v1724, %v1790
    %v1832 = vsel %vm1362, %v1725, %v1792
    %v1834 = vsel %vm1362, %v1726, %v1794
    %v1836 = vsel %vm1362, %v1727, %v1796
    %v1838 = vsel %vm1362, %v1728, %v1798
    %v1840 = vsel %vm1362, %v1729, %v1800
    %v1842 = vsel %vm1362, %v1730, %v1802
    %vm1843 = vcmask 261120
    %v1845 = vsel %vm1843, %v1828, %v1812
    %v1847 = vsel %vm1843, %v1830, %v1814
    %v1849 = vsel %vm1843, %v1832, %v1816
    %v1851 = vsel %vm1843, %v1834, %v1818
    %v1853 = vsel %vm1843, %v1836, %v1820
    %v1855 = vsel %vm1843, %v1838, %v1822
    %v1857 = vsel %vm1843, %v1840, %v1824
    %v1859 = vsel %vm1843, %v1842, %v1826
    %v1868 = vrot.slane %v1845, 1
    %v1869 = vrot.slane %v1845, 2
    %v1870 = vrot.slane %v1845, 3
    %v1871 = vrot.slane %v1845, 4
    %v1872 = vrot.slane %v1847, 1
    %v1873 = vrot.slane %v1847, 2
    %v1874 = vrot.slane %v1847, 3
    %v1875 = vrot.slane %v1847, 4
    %v1876 = vrot.slane %v1849, 1
    %v1877 = vrot.slane %v1849, 2
    %v1878 = vrot.slane %v1849, 3
    %v1879 = vrot.slane %v1849, 4
    %v1880 = vrot.slane %v1851, 1
    %v1881 = vrot.slane %v1851, 2
    %v1882 = vrot.slane %v1851, 3
    %v1883 = vrot.slane %v1851, 4
    %v1884 = vrot.slane %v1853, 1
    %v1885 = vrot.slane %v1853, 2
    %v1886 = vrot.slane %v1853, 3
    %v1887 = vrot.slane %v1853, 4
    %v1888 = vrot.slane %v1855, 1
    %v1889 = vrot.slane %v1855, 2
    %v1890 = vrot.slane %v1855, 3
    %v1891 = vrot.slane %v1855, 4
    %v1892 = vrot.slane %v1857, 1
    %v1893 = vrot.slane %v1857, 2
    %v1894 = vrot.slane %v1857, 3
    %v1895 = vrot.slane %v1857, 4
    %v1896 = vrot.slane %v1859, 1
    %v1897 = vrot.slane %v1859, 2
    %v1898 = vrot.slane %v1859, 3
    %v1899 = vrot.slane %v1859, 4
    %v1900 = vld [vmem:[%s5] sm:$0xf]
    %v1901 = vld [vmem:[%s5 + $0x4] sm:$0xf]
    %v1902 = vld [vmem:[%s5 + $0x8] sm:$0xf]
    %v1903 = vld [vmem:[%s5 + $0xc] sm:$0xf]
    %v1904 = vld [vmem:[%s5 + $0x10] sm:$0xf]
    %v1905 = vld [vmem:[%s5 + $0x14] sm:$0xf]
    %1906 = vst [vmem:[#allocation1] ss:$9 sm:$0xff] %v1845
    %s1908 = scalar_lea.vmem [#allocation1], 1
    %1909 = vst [vmem:[%s1908] ss:$9 sm:$0xff] %v1868
    %s1911 = scalar_lea.vmem [#allocation1], 2
    %1912 = vst [vmem:[%s1911] ss:$9 sm:$0xff] %v1869
    %s1914 = scalar_lea.vmem [#allocation1], 3
    %1915 = vst [vmem:[%s1914] ss:$9 sm:$0xff] %v1870
    %s1917 = scalar_lea.vmem [#allocation1], 4
    %1918 = vst [vmem:[%s1917] ss:$9 sm:$0xff] %v1871
    %s1919 = scalar_lea.vmem [#allocation1], 5
    %1920 = vst [vmem:[%s1919] ss:$9 sm:$0xff] %v1847
    %s1922 = scalar_lea.vmem [#allocation1], 6
    %1923 = vst [vmem:[%s1922] ss:$9 sm:$0xff] %v1872
    %s1925 = scalar_lea.vmem [#allocation1], 7
    %1926 = vst [vmem:[%s1925] ss:$9 sm:$0xff] %v1873
    %v1927 = vld [vmem:[#allocation1] sm:$0xff]
    %1929 = vst [vmem:[#allocation1] ss:$9 sm:$0xff] %v1874
    %1931 = vst [vmem:[%s1908] ss:$9 sm:$0xff] %v1875
    %1932 = vst [vmem:[%s1911] ss:$9 sm:$0xff] %v1849
    %1934 = vst [vmem:[%s1914] ss:$9 sm:$0xff] %v1876
    %1936 = vst [vmem:[%s1917] ss:$9 sm:$0xff] %v1877
    %1938 = vst [vmem:[%s1919] ss:$9 sm:$0xff] %v1878
    %1940 = vst [vmem:[%s1922] ss:$9 sm:$0xff] %v1879
    %1941 = vst [vmem:[%s1925] ss:$9 sm:$0xff] %v1851
    %v1942 = vld [vmem:[#allocation1] sm:$0xff]
    %1944 = vst [vmem:[#allocation1] ss:$9 sm:$0xff] %v1880
    %1946 = vst [vmem:[%s1908] ss:$9 sm:$0xff] %v1881
    %1948 = vst [vmem:[%s1911] ss:$9 sm:$0xff] %v1882
    %1950 = vst [vmem:[%s1914] ss:$9 sm:$0xff] %v1883
    %1951 = vst [vmem:[%s1917] ss:$9 sm:$0xff] %v1853
    %1953 = vst [vmem:[%s1919] ss:$9 sm:$0xff] %v1884
    %1955 = vst [vmem:[%s1922] ss:$9 sm:$0xff] %v1885
    %1957 = vst [vmem:[%s1925] ss:$9 sm:$0xff] %v1886
    %v1958 = vld [vmem:[#allocation1] sm:$0xff]
    %1960 = vst [vmem:[#allocation1] ss:$9 sm:$0xff] %v1887
    %1961 = vst [vmem:[%s1908] ss:$9 sm:$0xff] %v1855
    %1963 = vst [vmem:[%s1911] ss:$9 sm:$0xff] %v1888
    %1965 = vst [vmem:[%s1914] ss:$9 sm:$0xff] %v1889
    %1967 = vst [vmem:[%s1917] ss:$9 sm:$0xff] %v1890
    %1969 = vst [vmem:[%s1919] ss:$9 sm:$0xff] %v1891
    %1970 = vst [vmem:[%s1922] ss:$9 sm:$0xff] %v1857
    %1972 = vst [vmem:[%s1925] ss:$9 sm:$0xff] %v1892
    %v1973 = vld [vmem:[#allocation1] sm:$0xff]
    %1975 = vst [vmem:[#allocation1] ss:$9 sm:$0xff] %v1893
    %1977 = vst [vmem:[%s1908] ss:$9 sm:$0xff] %v1894
    %1979 = vst [vmem:[%s1911] ss:$9 sm:$0xff] %v1895
    %1980 = vst [vmem:[%s1914] ss:$9 sm:$0xff] %v1859
    %1982 = vst [vmem:[%s1917] ss:$9 sm:$0xff] %v1896
    %1984 = vst [vmem:[%s1919] ss:$9 sm:$0xff] %v1897
    %1986 = vst [vmem:[%s1922] ss:$9 sm:$0xff] %v1898
    %1988 = vst [vmem:[%s1925] ss:$9 sm:$0xff] %v1899
    %v1989 = vld [vmem:[#allocation1] sm:$0xff]
    %v1996 = vunpack.c.l.b16 %v1900
    %v1997 = vunpack.c.l.b16 %v1901
    %v1998 = vunpack.c.l.b16 %v1902
    %v1999 = vunpack.c.l.b16 %v1903
    %v2000 = vunpack.c.l.b16 %v1904
    %v2001 = vunpack.c.l.b16 %v1905
    %v2002 = vpack.c.b16 %v1997, %v1996
    %v2003 = vpack.c.b16 %v1999, %v1998
    %v2004 = vpack.c.b16 %v2001, %v2000
    %vm2008 = vcmask 392192
    %v2009 = vsel %vm2008, %v1927, 0
    %v2011 = vsel %vm2008, %v1942, 0
    %v2013 = vsel %vm2008, %v1958, 0
    %v2015 = vsel %vm2008, %v1973, 0
    %v2017 = vsel %vm2008, %v1989, 0
    %2019 = vmatpush.bf16.msra.mxu0 0
    %2020 = vmatpush.bf16.msra.mxu0 0
    %2021 = vmatpush.bf16.msra.mxu0 0
    %2022 = vmatpush.bf16.msra.mxu0 0
    %2023 = vmatpush.bf16.msra.mxu0 0
    %2024 = vmatpush.bf16.msra.mxu0 %v2004
    %2025 = vmatpush.bf16.msra.mxu0 %v2003
    %2026 = vmatpush.bf16.msra.mxu0 %v2002
    %2027 = vmatmul.bf16.gmra.mxu0 %v2009
    %v2028 = vpop.f32.mrf.mxu0
    %v2029 = vadd.f32 0.0, %v2028
    %v2030 = vpop.f32.mrf.mxu0
    %v2031 = vadd.f32 0.0, %v2030
    %2032 = vmatmul.bf16.gmra.mxu0 %v2011
    %v2033 = vpop.f32.mrf.mxu0
    %v2034 = vadd.f32 0.0, %v2033
    %v2035 = vpop.f32.mrf.mxu0
    %v2036 = vadd.f32 0.0, %v2035
    %2037 = vmatmul.bf16.gmra.mxu0 %v2013
    %v2038 = vpop.f32.mrf.mxu0
    %v2039 = vadd.f32 0.0, %v2038
    %v2040 = vpop.f32.mrf.mxu0
    %v2041 = vadd.f32 0.0, %v2040
    %2042 = vmatmul.bf16.gmra.mxu0 %v2015
    %v2043 = vpop.f32.mrf.mxu0
    %v2044 = vadd.f32 0.0, %v2043
    %v2045 = vpop.f32.mrf.mxu0
    %v2046 = vadd.f32 0.0, %v2045
    %2047 = vmatmul.bf16.gmra.mxu0 %v2017
    %v2048 = vpop.f32.mrf.mxu0
    %v2049 = vadd.f32 0.0, %v2048
    %v2050 = vpop.f32.mrf.mxu0
    %v2051 = vadd.f32 0.0, %v2050
    %2052 = vdwg.mxu0
    %v2063 = vrot.slane %v2029, 2
    %v2064 = vrot.slane %v2029, 4
    %v2065 = vrot.slane %v2029, 6
    %v2066 = vrot.slane %v2031, 2
    %v2067 = vrot.slane %v2031, 4
    %v2068 = vrot.slane %v2031, 6
    %v2069 = vrot.slane %v2034, 2
    %v2070 = vrot.slane %v2034, 4
    %v2071 = vrot.slane %v2034, 6
    %v2072 = vrot.slane %v2036, 2
    %v2073 = vrot.slane %v2036, 4
    %v2074 = vrot.slane %v2036, 6
    %v2075 = vrot.slane %v2039, 2
    %v2076 = vrot.slane %v2039, 4
    %v2077 = vrot.slane %v2039, 6
    %v2078 = vrot.slane %v2041, 2
    %v2079 = vrot.slane %v2041, 4
    %v2080 = vrot.slane %v2041, 6
    %v2081 = vrot.slane %v2044, 2
    %v2082 = vrot.slane %v2044, 4
    %v2083 = vrot.slane %v2044, 6
    %v2084 = vrot.slane %v2046, 2
    %v2085 = vrot.slane %v2046, 4
    %v2086 = vrot.slane %v2046, 6
    %v2087 = vrot.slane %v2049, 2
    %v2088 = vrot.slane %v2049, 4
    %v2089 = vrot.slane %v2049, 6
    %v2090 = vrot.slane %v2051, 2
    %v2091 = vrot.slane %v2051, 4
    %v2092 = vrot.slane %v2051, 6
    %v2123 = vld [vmem:[%s6] sm:$0x1]
    %v2125 = vperm.slane %v2123, 0
    %v2127 = vrot.slane %v2125, 2
    %v2128 = vrot.slane %v2125, 4
    %v2129 = vrot.slane %v2125, 6
    %v2133 = vadd.f32 %v2029, %v2125
    %v2134 = vadd.f32 %v2063, %v2127
    %v2135 = vadd.f32 %v2064, %v2128
    %v2136 = vadd.f32 %v2065, %v2129
    %v2137 = vadd.f32 %v2031, %v2125
    %v2138 = vadd.f32 %v2066, %v2125
    %v2139 = vadd.f32 %v2067, %v2127
    %v2140 = vadd.f32 %v2068, %v2128
    %v2141 = vadd.f32 %v2034, %v2129
    %v2142 = vadd.f32 %v2069, %v2125
    %v2143 = vadd.f32 %v2070, %v2125
    %v2144 = vadd.f32 %v2071, %v2127
    %v2145 = vadd.f32 %v2036, %v2128
    %v2146 = vadd.f32 %v2072, %v2129
    %v2147 = vadd.f32 %v2073, %v2125
    %v2148 = vadd.f32 %v2074, %v2125
    %v2149 = vadd.f32 %v2039, %v2127
    %v2150 = vadd.f32 %v2075, %v2128
    %v2151 = vadd.f32 %v2076, %v2129
    %v2152 = vadd.f32 %v2077, %v2125
    %v2153 = vadd.f32 %v2041, %v2125
    %v2154 = vadd.f32 %v2078, %v2127
    %v2155 = vadd.f32 %v2079, %v2128
    %v2156 = vadd.f32 %v2080, %v2129
    %v2157 = vadd.f32 %v2044, %v2125
    %v2158 = vadd.f32 %v2081, %v2125
    %v2159 = vadd.f32 %v2082, %v2127
    %v2160 = vadd.f32 %v2083, %v2128
    %v2161 = vadd.f32 %v2046, %v2129
    %v2162 = vadd.f32 %v2084, %v2125
    %v2163 = vadd.f32 %v2085, %v2125
    %v2164 = vadd.f32 %v2086, %v2127
    %v2165 = vadd.f32 %v2049, %v2128
    %v2166 = vadd.f32 %v2087, %v2129
    %v2167 = vadd.f32 %v2088, %v2125
    %v2168 = vadd.f32 %v2089, %v2125
    %v2169 = vadd.f32 %v2051, %v2127
    %v2170 = vadd.f32 %v2090, %v2128
    %v2171 = vadd.f32 %v2091, %v2129
    %v2172 = vadd.f32 %v2092, %v2125
    %2213 = vst [vmem:[#allocation1] ss:$4 sm:$0xff] %v2133
    %s2214 = scalar_lea.vmem [#allocation1], 1
    %2215 = vst [vmem:[%s2214] ss:$4 sm:$0xff] %v2134
    %s2216 = scalar_lea.vmem [#allocation1], 2
    %2217 = vst [vmem:[%s2216] ss:$4 sm:$0xff] %v2135
    %s2218 = scalar_lea.vmem [#allocation1], 3
    %2219 = vst [vmem:[%s2218] ss:$4 sm:$0xff] %v2136
    %s2220 = scalar_lea.vmem [#allocation1], 32
    %2221 = vst [vmem:[%s2220] ss:$4 sm:$0xff] %v2137
    %v2222 = vld.sshfl [vmem:[#allocation1] sm:$0xff pattern:$0x73625140]
    %v2223 = vld.sshfl [vmem:[#allocation1 + $0x20] sm:$0xff pattern:$0x73625140]
    %2224 = vst [vmem:[#allocation1] ss:$4 sm:$0xff] %v2138
    %2225 = vst [vmem:[%s2214] ss:$4 sm:$0xff] %v2139
    %2226 = vst [vmem:[%s2216] ss:$4 sm:$0xff] %v2140
    %2227 = vst [vmem:[%s2218] ss:$4 sm:$0xff] %v2141
    %2228 = vst [vmem:[%s2220] ss:$4 sm:$0xff] %v2142
    %v2229 = vld.sshfl [vmem:[#allocation1] sm:$0xff pattern:$0x73625140]
    %v2230 = vld.sshfl [vmem:[#allocation1 + $0x20] sm:$0xff pattern:$0x73625140]
    %2231 = vst [vmem:[#allocation1] ss:$4 sm:$0xff] %v2143
    %2232 = vst [vmem:[%s2214] ss:$4 sm:$0xff] %v2144
    %2233 = vst [vmem:[%s2216] ss:$4 sm:$0xff] %v2145
    %2234 = vst [vmem:[%s2218] ss:$4 sm:$0xff] %v2146
    %2235 = vst [vmem:[%s2220] ss:$4 sm:$0xff] %v2147
    %v2236 = vld.sshfl [vmem:[#allocation1] sm:$0xff pattern:$0x73625140]
    %v2237 = vld.sshfl [vmem:[#allocation1 + $0x20] sm:$0xff pattern:$0x73625140]
    %2238 = vst [vmem:[#allocation1] ss:$4 sm:$0xff] %v2148
    %2239 = vst [vmem:[%s2214] ss:$4 sm:$0xff] %v2149
    %2240 = vst [vmem:[%s2216] ss:$4 sm:$0xff] %v2150
    %2241 = vst [vmem:[%s2218] ss:$4 sm:$0xff] %v2151
    %2242 = vst [vmem:[%s2220] ss:$4 sm:$0xff] %v2152
    %v2243 = vld.sshfl [vmem:[#allocation1] sm:$0xff pattern:$0x73625140]
    %v2244 = vld.sshfl [vmem:[#allocation1 + $0x20] sm:$0xff pattern:$0x73625140]
    %2245 = vst [vmem:[#allocation1] ss:$4 sm:$0xff] %v2153
    %2246 = vst [vmem:[%s2214] ss:$4 sm:$0xff] %v2154
    %2247 = vst [vmem:[%s2216] ss:$4 sm:$0xff] %v2155
    %2248 = vst [vmem:[%s2218] ss:$4 sm:$0xff] %v2156
    %2249 = vst [vmem:[%s2220] ss:$4 sm:$0xff] %v2157
    %v2250 = vld.sshfl [vmem:[#allocation1] sm:$0xff pattern:$0x73625140]
    %v2251 = vld.sshfl [vmem:[#allocation1 + $0x20] sm:$0xff pattern:$0x73625140]
    %2252 = vst [vmem:[#allocation1] ss:$4 sm:$0xff] %v2158
    %2253 = vst [vmem:[%s2214] ss:$4 sm:$0xff] %v2159
    %2254 = vst [vmem:[%s2216] ss:$4 sm:$0xff] %v2160
    %2255 = vst [vmem:[%s2218] ss:$4 sm:$0xff] %v2161
    %2256 = vst [vmem:[%s2220] ss:$4 sm:$0xff] %v2162
    %v2257 = vld.sshfl [vmem:[#allocation1] sm:$0xff pattern:$0x73625140]
    %v2258 = vld.sshfl [vmem:[#allocation1 + $0x20] sm:$0xff pattern:$0x73625140]
    %2259 = vst [vmem:[#allocation1] ss:$4 sm:$0xff] %v2163
    %2260 = vst [vmem:[%s2214] ss:$4 sm:$0xff] %v2164
    %2261 = vst [vmem:[%s2216] ss:$4 sm:$0xff] %v2165
    %2262 = vst [vmem:[%s2218] ss:$4 sm:$0xff] %v2166
    %2263 = vst [vmem:[%s2220] ss:$4 sm:$0xff] %v2167
    %v2264 = vld.sshfl [vmem:[#allocation1] sm:$0xff pattern:$0x73625140]
    %v2265 = vld.sshfl [vmem:[#allocation1 + $0x20] sm:$0xff pattern:$0x73625140]
    %2266 = vst [vmem:[#allocation1] ss:$4 sm:$0xff] %v2168
    %2267 = vst [vmem:[%s2214] ss:$4 sm:$0xff] %v2169
    %2268 = vst [vmem:[%s2216] ss:$4 sm:$0xff] %v2170
    %2269 = vst [vmem:[%s2218] ss:$4 sm:$0xff] %v2171
    %2270 = vst [vmem:[%s2220] ss:$4 sm:$0xff] %v2172
    %v2271 = vld.sshfl [vmem:[#allocation1] sm:$0xff pattern:$0x73625140]
    %v2272 = vld.sshfl [vmem:[#allocation1 + $0x20] sm:$0xff pattern:$0x73625140]
    %v2289 = vsel %vm167, %v2223, -inf
    %v2290 = vmax.f32 %v2222, %v2289
    %v2291 = vrot.slane %v2290, 4
    %v2292 = vmax.f32 %v2290, %v2291
    %v2293 = vrot.slane %v2292, 2
    %v2294 = vmax.f32 %v2292, %v2293
    %v2295 = vrot.slane %v2294, 1
    %v2296 = vmax.f32 %v2294, %v2295
    %v2297 = vsel %vm167, %v2230, -inf
    %v2298 = vmax.f32 %v2229, %v2297
    %v2299 = vrot.slane %v2298, 4
    %v2300 = vmax.f32 %v2298, %v2299
    %v2301 = vrot.slane %v2300, 2
    %v2302 = vmax.f32 %v2300, %v2301
    %v2303 = vrot.slane %v2302, 1
    %v2304 = vmax.f32 %v2302, %v2303
    %v2305 = vsel %vm167, %v2237, -inf
    %v2306 = vmax.f32 %v2236, %v2305
    %v2307 = vrot.slane %v2306, 4
    %v2308 = vmax.f32 %v2306, %v2307
    %v2309 = vrot.slane %v2308, 2
    %v2310 = vmax.f32 %v2308, %v2309
    %v2311 = vrot.slane %v2310, 1
    %v2312 = vmax.f32 %v2310, %v2311
    %v2313 = vsel %vm167, %v2244, -inf
    %v2314 = vmax.f32 %v2243, %v2313
    %v2315 = vrot.slane %v2314, 4
    %v2316 = vmax.f32 %v2314, %v2315
    %v2317 = vrot.slane %v2316, 2
    %v2318 = vmax.f32 %v2316, %v2317
    %v2319 = vrot.slane %v2318, 1
    %v2320 = vmax.f32 %v2318, %v2319
    %v2321 = vsel %vm167, %v2251, -inf
    %v2322 = vmax.f32 %v2250, %v2321
    %v2323 = vrot.slane %v2322, 4
    %v2324 = vmax.f32 %v2322, %v2323
    %v2325 = vrot.slane %v2324, 2
    %v2326 = vmax.f32 %v2324, %v2325
    %v2327 = vrot.slane %v2326, 1
    %v2328 = vmax.f32 %v2326, %v2327
    %v2329 = vsel %vm167, %v2258, -inf
    %v2330 = vmax.f32 %v2257, %v2329
    %v2331 = vrot.slane %v2330, 4
    %v2332 = vmax.f32 %v2330, %v2331
    %v2333 = vrot.slane %v2332, 2
    %v2334 = vmax.f32 %v2332, %v2333
    %v2335 = vrot.slane %v2334, 1
    %v2336 = vmax.f32 %v2334, %v2335
    %v2337 = vsel %vm167, %v2265, -inf
    %v2338 = vmax.f32 %v2264, %v2337
    %v2339 = vrot.slane %v2338, 4
    %v2340 = vmax.f32 %v2338, %v2339
    %v2341 = vrot.slane %v2340, 2
    %v2342 = vmax.f32 %v2340, %v2341
    %v2343 = vrot.slane %v2342, 1
    %v2344 = vmax.f32 %v2342, %v2343
    %v2345 = vsel %vm167, %v2272, -inf
    %v2346 = vmax.f32 %v2271, %v2345
    %v2347 = vrot.slane %v2346, 4
    %v2348 = vmax.f32 %v2346, %v2347
    %v2349 = vrot.slane %v2348, 2
    %v2350 = vmax.f32 %v2348, %v2349
    %v2351 = vrot.slane %v2350, 1
    %v2352 = vmax.f32 %v2350, %v2351
    %v2353 = vmax.f32 %v2296, 0.0
    %v2354 = vmax.f32 %v2304, 0.0
    %v2355 = vmax.f32 %v2312, 0.0
    %v2356 = vmax.f32 %v2320, 0.0
    %v2357 = vmax.f32 %v2328, 0.0
    %v2358 = vmax.f32 %v2336, 0.0
    %v2359 = vmax.f32 %v2344, 0.0
    %v2360 = vmax.f32 %v2352, 0.0
    %v2369 = vsel %vm170, %v2354, %v2353
    %v2370 = vsel %vm176, %v2355, %v2369
    %v2371 = vsel %vm182, %v2356, %v2370
    %v2372 = vsel %vm188, %v2357, %v2371
    %v2373 = vsel %vm194, %v2358, %v2372
    %v2374 = vsel %vm200, %v2359, %v2373
    %vm2375 = vcmask 1047559
    %v2376 = vsel %vm2375, %v2360, %v2374
    %2378 = vst [vmem:[#allocation2] sm:$0xff] %v2376
    // Predicated region
    $region30: #{tpu_custom_call.1} parent=1 // pred_check
      _
    $region31: #{tpu_custom_call.1} parent=1 // pred_check_branch
      %2380 = sbr.rel (0) target = $region33
    $region32: #{tpu_custom_call.1} parent=1 // pred_region
      %2382 = vsyncadd [#allocation3], 0
      %s2384 = sshll.u32 [#allocation2], 4
      %s2385 = int_to_ptr.vmem [resolvable:$true] %s2384
      %s2386 = sshll.u32 %s7, 4
      %s2387 = int_to_ptr.hbm [resolvable:$true] %s2386
      %2389 = dma.vmem_to_hbm [thread:$0]  %s2385, 128, %s2387, [#allocation3]
    $region33: #{tpu_custom_call.1} parent=1 // pred_fallthru
      _
    // Predicated region
    $region34: #{tpu_custom_call.1} parent=1 // pred_check
      _
    $region35: #{tpu_custom_call.1} parent=1 // pred_check_branch
      %2391 = sbr.rel (0) target = $region37
    $region36: #{tpu_custom_call.1} parent=1 // pred_region
      %2393 = dma.done [#allocation3], 128
    $region37: #{tpu_custom_call.1} parent=1 // pred_fallthru
      _
    %2394 = vsyncpa [#allocation3], 1

</llo_original>
